<compile_context>
chip_gen: v5e
topology: v5e:2x2
jax: 0.10.0
libtpu: 0.0.40
codegen_flags: <defaults>
</compile_context>

<pallas_src>
import math

import jax
import jax.numpy as jnp
from jax import lax
from jax.experimental import pallas as pl
from jax.experimental.pallas import tpu as pltpu  # noqa: F401

# ---- small, module-consistent config -------------------------------------
DEPTH = 2
WIDTH = 32
NUM_HEADS = 4
HEAD_DIM = WIDTH // NUM_HEADS
MLP_DIM = 4 * WIDTH
B = 2
S = 8
BS = B * S                 # tokens in the flattened slab
HBS = NUM_HEADS * BS       # head-major key axis length
EPS = 1e-6
NEG_INF = -1e30


# ---- in-kernel helpers -----------------------------------------------------
def _layernorm(v, scale, bias):
  # v: (N, W); scale/bias: (1, W).  Single-pass: the two reductions are
  # independent and overlap on the XLU.  Matches torch.nn.LayerNorm(eps=1e-6)
  # (biased variance, eps inside rsqrt).
  m = jnp.mean(v, axis=-1, keepdims=True)
  ms = jnp.mean(v * v, axis=-1, keepdims=True)
  var = ms - m * m
  return (v - m) * lax.rsqrt(var + EPS) * scale + bias


def _gelu_tanh(v):
  # nn.GELU(approximate='tanh')
  c = math.sqrt(2.0 / math.pi)
  return 0.5 * v * (1.0 + jnp.tanh(c * (v + 0.044715 * v * v * v)))


# ---- the kernel ------------------------------------------------------------
def encoder_kernel(x_ref, attn_bias_ref, head_mask_ref,
                   ln0_s_ref, ln0_b_ref,
                   wqkv_ref, bqkv_ref, wo_ref, bo_ref,
                   ln2_s_ref, ln2_b_ref,
                   w1_ref, b1_ref, w2_ref, b2_ref,
                   enc_s_ref, enc_b_ref,
                   out_ref):
  x = x_ref[...]                        # (BS, W) token slab, f32
  attn_bias = attn_bias_ref[...]        # (BS, HBS): 0 same-batch / -1e30 else
  head_mask = head_mask_ref[...]        # (HBS, W): head-block-diagonal 0/1

  for l in range(DEPTH):                # static unrolled depth loop
    ln0_s, ln0_b = ln0_s_ref[l], ln0_b_ref[l]    # (1, W)
    ln2_s, ln2_b = ln2_s_ref[l], ln2_b_ref[l]    # (1, W)
    wqkv, bqkv = wqkv_ref[l], bqkv_ref[l]        # (W, 3W), (1, 3W)  (Q pre-scaled)
    wo, bo = wo_ref[l], bo_ref[l]                # (W, W), (1, W)
    w1, b1 = w1_ref[l], b1_ref[l]                # (W, M), (1, M)
    w2, b2 = w2_ref[l], b2_ref[l]                # (M, W), (1, W)

    # --- pre-LN multi-head self-attention -------------------------------
    y = _layernorm(x, ln0_s, ln0_b)
    qkv = jnp.dot(y, wqkv, preferred_element_type=jnp.float32) + bqkv
    q = qkv[:, 0:WIDTH]                 # already scaled by 1/sqrt(head_dim)
    k = qkv[:, WIDTH:2 * WIDTH]
    v = qkv[:, 2 * WIDTH:3 * WIDTH]

    # Head-block-diagonal K/V: replicate tokens along sublanes (one block per
    # head) and zero the other heads' lanes, so a single matmul yields all
    # per-head scores / contexts at once (no head loop, no 8-lane slices).
    kbig = jnp.concatenate([k] * NUM_HEADS, axis=0) * head_mask   # (HBS, W)
    vbig = jnp.concatenate([v] * NUM_HEADS, axis=0) * head_mask   # (HBS, W)

    # scores[i, h*BS + j] = <q_h[i], k_h[j]> / sqrt(Dh)  (+ batch mask bias)
    scores = lax.dot_general(
        q, kbig, (((1,), (1,)), ((), ())),
        preferred_element_type=jnp.float32) + attn_bias           # (BS, HBS)

    # A single row-wide max shift is exact (shift is constant per head block).
    # TODO(synk): use a per-head max if this kernel is ever run with trained
    # weights whose heads have wildly different score scales (underflow risk).
    m = jnp.max(scores, axis=-1, keepdims=True)
    e = jnp.exp(scores - m)             # invalid columns -> exactly 0

    # Deferred softmax normalization: two independent matmuls off `e`, then a
    # single elementwise normalize of the context (denominator replicated
    # across each head's lanes by `e @ head_mask`).
    ctx_un = jnp.dot(e, vbig, preferred_element_type=jnp.float32)       # (BS, W)
    denom_w = jnp.dot(e, head_mask, preferred_element_type=jnp.float32)  # (BS, W)
    ctx = ctx_un * pl.reciprocal(denom_w)        # exact reciprocal

    x = x + jnp.dot(ctx, wo, preferred_element_type=jnp.float32) + bo

    # --- pre-LN MLP -------------------------------------------------------
    y2 = _layernorm(x, ln2_s, ln2_b)
    h1 = jnp.dot(y2, w1, preferred_element_type=jnp.float32) + b1
    g = _gelu_tanh(h1)
    x = x + jnp.dot(g, w2, preferred_element_type=jnp.float32) + b2

  # Final encoder LayerNorm, written once.
  out_ref[...] = _layernorm(x, enc_s_ref[...], enc_b_ref[...]).astype(
      out_ref.dtype)


# ---- one-time parameter / constant preparation ------------------------------
def prepare_params(params):
  """Fuses QKV, folds the attention scale into Q, and builds the mask
  constants.  Called ONCE; its cost is amortized out of the forward path."""
  (ln0_s, ln0_b, wq, bq, wk, bk, wv, bv, wo, bo,
   ln2_s, ln2_b, w1, b1, w2, b2, enc_s, enc_b) = params

  inv_sqrt_dh = 1.0 / math.sqrt(HEAD_DIM)
  # Fold 1/sqrt(head_dim) into the Q projection (weight AND bias).
  wqkv = jnp.concatenate([wq * inv_sqrt_dh, wk, wv], axis=-1)   # (D, W, 3W)
  bqkv = jnp.concatenate([bq * inv_sqrt_dh, bk, bv], axis=-1)   # (D, 1, 3W)

  # Additive score bias: 0 where the key token belongs to the same batch
  # element as the query token (within its head block), -1e30 otherwise.
  row_i = jnp.arange(BS, dtype=jnp.int32)[:, None]
  col_i = jnp.arange(HBS, dtype=jnp.int32)[None, :]
  valid = (row_i // S) == ((col_i % BS) // S)
  attn_bias = jnp.where(valid, 0.0, NEG_INF).astype(jnp.float32)   # (BS, HBS)

  # Head-block-diagonal lane mask: row block h keeps only head h's lanes.
  head_mask = ((jnp.arange(HBS, dtype=jnp.int32)[:, None] // BS) ==
               (jnp.arange(WIDTH, dtype=jnp.int32)[None, :] // HEAD_DIM)
               ).astype(jnp.float32)                               # (HBS, W)

  return (attn_bias, head_mask, ln0_s, ln0_b, wqkv, bqkv, wo, bo,
          ln2_s, ln2_b, w1, b1, w2, b2, enc_s, enc_b)


# ---- jitted forward wrapper -------------------------------------------------
@jax.jit
def encoder_forward(x, kparams):
  (attn_bias, head_mask, ln0_s, ln0_b, wqkv, bqkv, wo, bo,
   ln2_s, ln2_b, w1, b1, w2, b2, enc_s, enc_b) = kparams

  x2 = x.reshape(BS, WIDTH).astype(jnp.float32)   # flatten (B, S) -> tokens

  out = pl.pallas_call(
      encoder_kernel,
      out_shape=jax.ShapeDtypeStruct((BS, WIDTH), jnp.float32),
      # No grid: single invocation; activations + ~100 KB of stacked params
      # stay VMEM-resident for the whole kernel at this toy size.
  )(x2, attn_bias, head_mask, ln0_s, ln0_b, wqkv, bqkv, wo, bo,
    ln2_s, ln2_b, w1, b1, w2, b2, enc_s, enc_b)

  return out.reshape(B, S, WIDTH)


# ---- deterministic parameter init (mirrors the module's reset_parameters) --
def init_params(key):
  counter = [0]

  def next_key():
    counter[0] += 1
    return jax.random.fold_in(key, counter[0])

  def xavier(fan_in, fan_out):
    limit = math.sqrt(6.0 / (fan_in + fan_out))
    return jax.random.uniform(next_key(), (fan_in, fan_out), jnp.float32,
                              -limit, limit)

  def stacked_xavier(fan_in, fan_out):
    return jnp.stack([xavier(fan_in, fan_out) for _ in range(DEPTH)])

  ln0_s = jnp.ones((DEPTH, 1, WIDTH), jnp.float32)
  ln0_b = jnp.zeros((DEPTH, 1, WIDTH), jnp.float32)
  ln2_s = jnp.ones((DEPTH, 1, WIDTH), jnp.float32)
  ln2_b = jnp.zeros((DEPTH, 1, WIDTH), jnp.float32)

  wq = stacked_xavier(WIDTH, WIDTH)
  wk = stacked_xavier(WIDTH, WIDTH)
  wv = stacked_xavier(WIDTH, WIDTH)
  wo = stacked_xavier(WIDTH, WIDTH)
  # attention biases are initialized to 0.0 in the reference module
  bq = jnp.zeros((DEPTH, 1, WIDTH), jnp.float32)
  bk = jnp.zeros((DEPTH, 1, WIDTH), jnp.float32)
  bv = jnp.zeros((DEPTH, 1, WIDTH), jnp.float32)
  bo = jnp.zeros((DEPTH, 1, WIDTH), jnp.float32)

  w1 = stacked_xavier(WIDTH, MLP_DIM)
  w2 = stacked_xavier(MLP_DIM, WIDTH)
  # MLP biases: normal(std=1e-6)
  b1 = 1e-6 * jax.random.normal(next_key(), (DEPTH, 1, MLP_DIM), jnp.float32)
  b2 = 1e-6 * jax.random.normal(next_key(), (DEPTH, 1, WIDTH), jnp.float32)

  enc_s = jnp.ones((1, WIDTH), jnp.float32)
  enc_b = jnp.zeros((1, WIDTH), jnp.float32)

  return (ln0_s, ln0_b, wq, bq, wk, bk, wv, bv, wo, bo,
          ln2_s, ln2_b, w1, b1, w2, b2, enc_s, enc_b)


# ---- plain-JAX reference (same math as the PyTorch module) ------------------
def encoder_reference(x, params):
  (ln0_s, ln0_b, wq, bq, wk, bk, wv, bv, wo, bo,
   ln2_s, ln2_b, w1, b1, w2, b2, enc_s, enc_b) = params
  hp = lax.Precision.HIGHEST   # keep the reference in true f32 matmuls

  def ln(v, s, b):
    mean = jnp.mean(v, -1, keepdims=True)
    var = jnp.mean(jnp.square(v - mean), -1, keepdims=True)
    return (v - mean) / jnp.sqrt(var + EPS) * s + b

  def gelu_tanh(v):
    c = math.sqrt(2.0 / math.pi)
    return 0.5 * v * (1.0 + jnp.tanh(c * (v + 0.044715 * v ** 3)))

  x = x.astype(jnp.float32)
  for l in range(DEPTH):
    y = ln(x, ln0_s[l], ln0_b[l])
    q = jnp.dot(y, wq[l], precision=hp) + bq[l]
    k = jnp.dot(y, wk[l], precision=hp) + bk[l]
    v = jnp.dot(y, wv[l], precision=hp) + bv[l]
    qh = q.reshape(B, S, NUM_HEADS, HEAD_DIM).transpose(0, 2, 1, 3)
    kh = k.reshape(B, S, NUM_HEADS, HEAD_DIM).transpose(0, 2, 1, 3)
    vh = v.reshape(B, S, NUM_HEADS, HEAD_DIM).transpose(0, 2, 1, 3)
    scores = jnp.einsum('bhqd,bhkd->bhqk', qh, kh,
                        precision=hp) / math.sqrt(HEAD_DIM)
    probs = jax.nn.softmax(scores, axis=-1)
    ctx = jnp.einsum('bhqk,bhkd->bhqd', probs, vh, precision=hp)
    ctx = ctx.transpose(0, 2, 1, 3).reshape(B, S, WIDTH)
    x = x + (jnp.dot(ctx, wo[l], precision=hp) + bo[l])
    y2 = ln(x, ln2_s[l], ln2_b[l])
    h1 = gelu_tanh(jnp.dot(y2, w1[l], precision=hp) + b1[l])
    x = x + (jnp.dot(h1, w2[l], precision=hp) + b2[l])
  return ln(x, enc_s, enc_b)


if __name__ == "__main__":
  key = jax.random.PRNGKey(0)
  x = jax.random.normal(jax.random.fold_in(key, 1), (B, S, WIDTH), jnp.float32)
  params = init_params(jax.random.fold_in(key, 2))
  kparams = prepare_params(params)   # one-time: QKV fuse, scale fold, masks

  out = encoder_forward(x, kparams)
  out = jax.block_until_ready(out)

  ref = encoder_reference(x, params)
  assert out.shape == (B, S, WIDTH)
  max_err = float(jnp.max(jnp.abs(out - ref)))
  # Exact softmax reciprocal + f32 matmuls -> tight tolerance restored.
  assert jnp.allclose(out, ref, rtol=1e-4, atol=1e-4), max_err
  print("KERNEL_OK")
</pallas_src>

<mosaic_0001>
module attributes {stable_mosaic.version = 11 : i64} {
  func.func @encoder_kernel(%arg0: memref<16x32xf32, #tpu.memory_space<vmem>>, %arg1: memref<16x64xf32, #tpu.memory_space<vmem>>, %arg2: memref<64x32xf32, #tpu.memory_space<vmem>>, %arg3: memref<2x1x32xf32, #tpu.memory_space<vmem>>, %arg4: memref<2x1x32xf32, #tpu.memory_space<vmem>>, %arg5: memref<2x32x96xf32, #tpu.memory_space<vmem>>, %arg6: memref<2x1x96xf32, #tpu.memory_space<vmem>>, %arg7: memref<2x32x32xf32, #tpu.memory_space<vmem>>, %arg8: memref<2x1x32xf32, #tpu.memory_space<vmem>>, %arg9: memref<2x1x32xf32, #tpu.memory_space<vmem>>, %arg10: memref<2x1x32xf32, #tpu.memory_space<vmem>>, %arg11: memref<2x32x128xf32, #tpu.memory_space<vmem>>, %arg12: memref<2x1x128xf32, #tpu.memory_space<vmem>>, %arg13: memref<2x128x32xf32, #tpu.memory_space<vmem>>, %arg14: memref<2x1x32xf32, #tpu.memory_space<vmem>>, %arg15: memref<1x32xf32, #tpu.memory_space<vmem>>, %arg16: memref<1x32xf32, #tpu.memory_space<vmem>>, %arg17: memref<16x32xf32, #tpu.memory_space<vmem>>) attributes {dimension_semantics = [], scalar_prefetch = 0 : i64, scratch_operands = 0 : i64, tpu.core_type = #tpu.core_type<tc>} {
    %c0 = arith.constant 0 : index
    %c0_0 = arith.constant 0 : index
    %0 = vector.load %arg0[%c0, %c0_0] : memref<16x32xf32, #tpu.memory_space<vmem>>, vector<16x32xf32>
    %c0_1 = arith.constant 0 : index
    %c0_2 = arith.constant 0 : index
    %1 = vector.load %arg1[%c0_1, %c0_2] : memref<16x64xf32, #tpu.memory_space<vmem>>, vector<16x64xf32>
    %c0_3 = arith.constant 0 : index
    %c0_4 = arith.constant 0 : index
    %2 = vector.load %arg2[%c0_3, %c0_4] : memref<64x32xf32, #tpu.memory_space<vmem>>, vector<64x32xf32>
    %c0_5 = arith.constant 0 : index
    %c0_6 = arith.constant 0 : index
    %c0_7 = arith.constant 0 : index
    %3 = vector.load %arg3[%c0_5, %c0_6, %c0_7] : memref<2x1x32xf32, #tpu.memory_space<vmem>>, vector<1x1x32xf32>
    %4 = vector.shape_cast %3 : vector<1x1x32xf32> to vector<1x32xf32>
    %c0_8 = arith.constant 0 : index
    %c0_9 = arith.constant 0 : index
    %c0_10 = arith.constant 0 : index
    %5 = vector.load %arg4[%c0_8, %c0_9, %c0_10] : memref<2x1x32xf32, #tpu.memory_space<vmem>>, vector<1x1x32xf32>
    %6 = vector.shape_cast %5 : vector<1x1x32xf32> to vector<1x32xf32>
    %c0_11 = arith.constant 0 : index
    %c0_12 = arith.constant 0 : index
    %c0_13 = arith.constant 0 : index
    %7 = vector.load %arg9[%c0_11, %c0_12, %c0_13] : memref<2x1x32xf32, #tpu.memory_space<vmem>>, vector<1x1x32xf32>
    %8 = vector.shape_cast %7 : vector<1x1x32xf32> to vector<1x32xf32>
    %c0_14 = arith.constant 0 : index
    %c0_15 = arith.constant 0 : index
    %c0_16 = arith.constant 0 : index
    %9 = vector.load %arg10[%c0_14, %c0_15, %c0_16] : memref<2x1x32xf32, #tpu.memory_space<vmem>>, vector<1x1x32xf32>
    %10 = vector.shape_cast %9 : vector<1x1x32xf32> to vector<1x32xf32>
    %c0_17 = arith.constant 0 : index
    %c0_18 = arith.constant 0 : index
    %c0_19 = arith.constant 0 : index
    %11 = vector.load %arg5[%c0_17, %c0_18, %c0_19] : memref<2x32x96xf32, #tpu.memory_space<vmem>>, vector<1x32x96xf32>
    %12 = vector.shape_cast %11 : vector<1x32x96xf32> to vector<32x96xf32>
    %c0_20 = arith.constant 0 : index
    %c0_21 = arith.constant 0 : index
    %c0_22 = arith.constant 0 : index
    %13 = vector.load %arg6[%c0_20, %c0_21, %c0_22] : memref<2x1x96xf32, #tpu.memory_space<vmem>>, vector<1x1x96xf32>
    %14 = vector.shape_cast %13 : vector<1x1x96xf32> to vector<1x96xf32>
    %c0_23 = arith.constant 0 : index
    %c0_24 = arith.constant 0 : index
    %c0_25 = arith.constant 0 : index
    %15 = vector.load %arg7[%c0_23, %c0_24, %c0_25] : memref<2x32x32xf32, #tpu.memory_space<vmem>>, vector<1x32x32xf32>
    %16 = vector.shape_cast %15 : vector<1x32x32xf32> to vector<32x32xf32>
    %c0_26 = arith.constant 0 : index
    %c0_27 = arith.constant 0 : index
    %c0_28 = arith.constant 0 : index
    %17 = vector.load %arg8[%c0_26, %c0_27, %c0_28] : memref<2x1x32xf32, #tpu.memory_space<vmem>>, vector<1x1x32xf32>
    %18 = vector.shape_cast %17 : vector<1x1x32xf32> to vector<1x32xf32>
    %c0_29 = arith.constant 0 : index
    %c0_30 = arith.constant 0 : index
    %c0_31 = arith.constant 0 : index
    %19 = vector.load %arg11[%c0_29, %c0_30, %c0_31] : memref<2x32x128xf32, #tpu.memory_space<vmem>>, vector<1x32x128xf32>
    %20 = vector.shape_cast %19 : vector<1x32x128xf32> to vector<32x128xf32>
    %c0_32 = arith.constant 0 : index
    %c0_33 = arith.constant 0 : index
    %c0_34 = arith.constant 0 : index
    %21 = vector.load %arg12[%c0_32, %c0_33, %c0_34] : memref<2x1x128xf32, #tpu.memory_space<vmem>>, vector<1x1x128xf32>
    %22 = vector.shape_cast %21 : vector<1x1x128xf32> to vector<1x128xf32>
    %c0_35 = arith.constant 0 : index
    %c0_36 = arith.constant 0 : index
    %c0_37 = arith.constant 0 : index
    %23 = vector.load %arg13[%c0_35, %c0_36, %c0_37] : memref<2x128x32xf32, #tpu.memory_space<vmem>>, vector<1x128x32xf32>
    %24 = vector.shape_cast %23 : vector<1x128x32xf32> to vector<128x32xf32>
    %c0_38 = arith.constant 0 : index
    %c0_39 = arith.constant 0 : index
    %c0_40 = arith.constant 0 : index
    %25 = vector.load %arg14[%c0_38, %c0_39, %c0_40] : memref<2x1x32xf32, #tpu.memory_space<vmem>>, vector<1x1x32xf32>
    %26 = vector.shape_cast %25 : vector<1x1x32xf32> to vector<1x32xf32>
    %cst = arith.constant dense<0.000000e+00> : vector<16xf32>
    %27 = vector.multi_reduction <add>, %0, %cst [1] : vector<16x32xf32> to vector<16xf32>
    %28 = vector.shape_cast %27 : vector<16xf32> to vector<16x1xf32>
    %cst_41 = arith.constant 3.200000e+01 : f32
    %29 = vector.broadcast %cst_41 : f32 to vector<16x1xf32>
    %30 = arith.divf %28, %29 : vector<16x1xf32>
    %31 = arith.mulf %0, %0 : vector<16x32xf32>
    %cst_42 = arith.constant dense<0.000000e+00> : vector<16xf32>
    %32 = vector.multi_reduction <add>, %31, %cst_42 [1] : vector<16x32xf32> to vector<16xf32>
    %33 = vector.shape_cast %32 : vector<16xf32> to vector<16x1xf32>
    %cst_43 = arith.constant 3.200000e+01 : f32
    %34 = vector.broadcast %cst_43 : f32 to vector<16x1xf32>
    %35 = arith.divf %33, %34 : vector<16x1xf32>
    %36 = arith.mulf %30, %30 : vector<16x1xf32>
    %37 = arith.subf %35, %36 : vector<16x1xf32>
    %38 = vector.broadcast %30 : vector<16x1xf32> to vector<16x32xf32>
    %39 = arith.subf %0, %38 : vector<16x32xf32>
    %cst_44 = arith.constant 9.99999997E-7 : f32
    %40 = vector.broadcast %cst_44 : f32 to vector<16x1xf32>
    %41 = arith.addf %37, %40 : vector<16x1xf32>
    %42 = math.rsqrt %41 : vector<16x1xf32>
    %43 = vector.broadcast %42 : vector<16x1xf32> to vector<16x32xf32>
    %44 = arith.mulf %39, %43 : vector<16x32xf32>
    %45 = vector.broadcast %4 : vector<1x32xf32> to vector<16x32xf32>
    %46 = arith.mulf %44, %45 : vector<16x32xf32>
    %47 = vector.broadcast %6 : vector<1x32xf32> to vector<16x32xf32>
    %48 = arith.addf %46, %47 : vector<16x32xf32>
    %cst_45 = arith.constant dense<0.000000e+00> : vector<16x96xf32>
    %49 = tpu.matmul %48, %12, %cst_45 {dimension_numbers = #tpu.dot_dimension_numbers<[1], [0], [0], [1], [0, 0, 1, 1], [], []>} : vector<16x32xf32>, vector<32x96xf32>, vector<16x96xf32> -> vector<16x96xf32>
    %50 = vector.broadcast %14 : vector<1x96xf32> to vector<16x96xf32>
    %51 = arith.addf %49, %50 : vector<16x96xf32>
    %52 = vector.extract_strided_slice %51 {offsets = [0, 0], sizes = [16, 32], strides = [1, 1]} : vector<16x96xf32> to vector<16x32xf32>
    %53 = vector.extract_strided_slice %51 {offsets = [0, 32], sizes = [16, 32], strides = [1, 1]} : vector<16x96xf32> to vector<16x32xf32>
    %54 = vector.extract_strided_slice %51 {offsets = [0, 64], sizes = [16, 32], strides = [1, 1]} : vector<16x96xf32> to vector<16x32xf32>
    %55 = tpu.concatenate %53, %53, %53, %53 in 0 : vector<16x32xf32>, vector<16x32xf32>, vector<16x32xf32>, vector<16x32xf32> -> vector<64x32xf32>
    %56 = arith.mulf %55, %2 : vector<64x32xf32>
    %57 = tpu.concatenate %54, %54, %54, %54 in 0 : vector<16x32xf32>, vector<16x32xf32>, vector<16x32xf32>, vector<16x32xf32> -> vector<64x32xf32>
    %58 = arith.mulf %57, %2 : vector<64x32xf32>
    %cst_46 = arith.constant dense<0.000000e+00> : vector<16x64xf32>
    %59 = tpu.matmul %52, %56, %cst_46 {dimension_numbers = #tpu.dot_dimension_numbers<[1], [1], [0], [0], [0, 0, 1, 0], [], []>} : vector<16x32xf32>, vector<64x32xf32>, vector<16x64xf32> -> vector<16x64xf32>
    %60 = arith.addf %59, %1 : vector<16x64xf32>
    %cst_47 = arith.constant dense<0xFF800000> : vector<16xf32>
    %61 = vector.multi_reduction <maximumf>, %60, %cst_47 [1] : vector<16x64xf32> to vector<16xf32>
    %62 = vector.shape_cast %61 : vector<16xf32> to vector<16x1xf32>
    %63 = vector.broadcast %62 : vector<16x1xf32> to vector<16x64xf32>
    %64 = arith.subf %60, %63 : vector<16x64xf32>
    %65 = math.exp %64 : vector<16x64xf32>
    %cst_48 = arith.constant dense<0.000000e+00> : vector<16x32xf32>
    %66 = tpu.matmul %65, %58, %cst_48 {dimension_numbers = #tpu.dot_dimension_numbers<[1], [0], [0], [1], [0, 0, 1, 1], [], []>} : vector<16x64xf32>, vector<64x32xf32>, vector<16x32xf32> -> vector<16x32xf32>
    %cst_49 = arith.constant dense<0.000000e+00> : vector<16x32xf32>
    %67 = tpu.matmul %65, %2, %cst_49 {dimension_numbers = #tpu.dot_dimension_numbers<[1], [0], [0], [1], [0, 0, 1, 1], [], []>} : vector<16x64xf32>, vector<64x32xf32>, vector<16x32xf32> -> vector<16x32xf32>
    %68 = tpu.reciprocal %67 : vector<16x32xf32> -> vector<16x32xf32>
    %69 = arith.mulf %66, %68 : vector<16x32xf32>
    %cst_50 = arith.constant dense<0.000000e+00> : vector<16x32xf32>
    %70 = tpu.matmul %69, %16, %cst_50 {dimension_numbers = #tpu.dot_dimension_numbers<[1], [0], [0], [1], [0, 0, 1, 1], [], []>} : vector<16x32xf32>, vector<32x32xf32>, vector<16x32xf32> -> vector<16x32xf32>
    %71 = arith.addf %0, %70 : vector<16x32xf32>
    %72 = vector.broadcast %18 : vector<1x32xf32> to vector<16x32xf32>
    %73 = arith.addf %71, %72 : vector<16x32xf32>
    %cst_51 = arith.constant dense<0.000000e+00> : vector<16xf32>
    %74 = vector.multi_reduction <add>, %73, %cst_51 [1] : vector<16x32xf32> to vector<16xf32>
    %75 = vector.shape_cast %74 : vector<16xf32> to vector<16x1xf32>
    %cst_52 = arith.constant 3.200000e+01 : f32
    %76 = vector.broadcast %cst_52 : f32 to vector<16x1xf32>
    %77 = arith.divf %75, %76 : vector<16x1xf32>
    %78 = arith.mulf %73, %73 : vector<16x32xf32>
    %cst_53 = arith.constant dense<0.000000e+00> : vector<16xf32>
    %79 = vector.multi_reduction <add>, %78, %cst_53 [1] : vector<16x32xf32> to vector<16xf32>
    %80 = vector.shape_cast %79 : vector<16xf32> to vector<16x1xf32>
    %cst_54 = arith.constant 3.200000e+01 : f32
    %81 = vector.broadcast %cst_54 : f32 to vector<16x1xf32>
    %82 = arith.divf %80, %81 : vector<16x1xf32>
    %83 = arith.mulf %77, %77 : vector<16x1xf32>
    %84 = arith.subf %82, %83 : vector<16x1xf32>
    %85 = vector.broadcast %77 : vector<16x1xf32> to vector<16x32xf32>
    %86 = arith.subf %73, %85 : vector<16x32xf32>
    %cst_55 = arith.constant 9.99999997E-7 : f32
    %87 = vector.broadcast %cst_55 : f32 to vector<16x1xf32>
    %88 = arith.addf %84, %87 : vector<16x1xf32>
    %89 = math.rsqrt %88 : vector<16x1xf32>
    %90 = vector.broadcast %89 : vector<16x1xf32> to vector<16x32xf32>
    %91 = arith.mulf %86, %90 : vector<16x32xf32>
    %92 = vector.broadcast %8 : vector<1x32xf32> to vector<16x32xf32>
    %93 = arith.mulf %91, %92 : vector<16x32xf32>
    %94 = vector.broadcast %10 : vector<1x32xf32> to vector<16x32xf32>
    %95 = arith.addf %93, %94 : vector<16x32xf32>
    %cst_56 = arith.constant dense<0.000000e+00> : vector<16x128xf32>
    %96 = tpu.matmul %95, %20, %cst_56 {dimension_numbers = #tpu.dot_dimension_numbers<[1], [0], [0], [1], [0, 0, 1, 1], [], []>} : vector<16x32xf32>, vector<32x128xf32>, vector<16x128xf32> -> vector<16x128xf32>
    %97 = vector.broadcast %22 : vector<1x128xf32> to vector<16x128xf32>
    %98 = arith.addf %96, %97 : vector<16x128xf32>
    %cst_57 = arith.constant 5.000000e-01 : f32
    %99 = vector.broadcast %cst_57 : f32 to vector<16x128xf32>
    %100 = arith.mulf %99, %98 : vector<16x128xf32>
    %cst_58 = arith.constant 4.471500e-02 : f32
    %101 = vector.broadcast %cst_58 : f32 to vector<16x128xf32>
    %102 = arith.mulf %101, %98 : vector<16x128xf32>
    %103 = arith.mulf %102, %98 : vector<16x128xf32>
    %104 = arith.mulf %103, %98 : vector<16x128xf32>
    %105 = arith.addf %98, %104 : vector<16x128xf32>
    %cst_59 = arith.constant 0.797884583 : f32
    %106 = vector.broadcast %cst_59 : f32 to vector<16x128xf32>
    %107 = arith.mulf %106, %105 : vector<16x128xf32>
    %108 = math.tanh %107 : vector<16x128xf32>
    %cst_60 = arith.constant 1.000000e+00 : f32
    %109 = vector.broadcast %cst_60 : f32 to vector<16x128xf32>
    %110 = arith.addf %109, %108 : vector<16x128xf32>
    %111 = arith.mulf %100, %110 : vector<16x128xf32>
    %cst_61 = arith.constant dense<0.000000e+00> : vector<16x32xf32>
    %112 = tpu.matmul %111, %24, %cst_61 {dimension_numbers = #tpu.dot_dimension_numbers<[1], [0], [0], [1], [0, 0, 1, 1], [], []>} : vector<16x128xf32>, vector<128x32xf32>, vector<16x32xf32> -> vector<16x32xf32>
    %113 = arith.addf %73, %112 : vector<16x32xf32>
    %114 = vector.broadcast %26 : vector<1x32xf32> to vector<16x32xf32>
    %115 = arith.addf %113, %114 : vector<16x32xf32>
    %c1 = arith.constant 1 : index
    %c0_62 = arith.constant 0 : index
    %c0_63 = arith.constant 0 : index
    %116 = vector.load %arg3[%c1, %c0_62, %c0_63] : memref<2x1x32xf32, #tpu.memory_space<vmem>>, vector<1x1x32xf32>
    %117 = vector.shape_cast %116 : vector<1x1x32xf32> to vector<1x32xf32>
    %c1_64 = arith.constant 1 : index
    %c0_65 = arith.constant 0 : index
    %c0_66 = arith.constant 0 : index
    %118 = vector.load %arg4[%c1_64, %c0_65, %c0_66] : memref<2x1x32xf32, #tpu.memory_space<vmem>>, vector<1x1x32xf32>
    %119 = vector.shape_cast %118 : vector<1x1x32xf32> to vector<1x32xf32>
    %c1_67 = arith.constant 1 : index
    %c0_68 = arith.constant 0 : index
    %c0_69 = arith.constant 0 : index
    %120 = vector.load %arg9[%c1_67, %c0_68, %c0_69] : memref<2x1x32xf32, #tpu.memory_space<vmem>>, vector<1x1x32xf32>
    %121 = vector.shape_cast %120 : vector<1x1x32xf32> to vector<1x32xf32>
    %c1_70 = arith.constant 1 : index
    %c0_71 = arith.constant 0 : index
    %c0_72 = arith.constant 0 : index
    %122 = vector.load %arg10[%c1_70, %c0_71, %c0_72] : memref<2x1x32xf32, #tpu.memory_space<vmem>>, vector<1x1x32xf32>
    %123 = vector.shape_cast %122 : vector<1x1x32xf32> to vector<1x32xf32>
    %c1_73 = arith.constant 1 : index
    %c0_74 = arith.constant 0 : index
    %c0_75 = arith.constant 0 : index
    %124 = vector.load %arg5[%c1_73, %c0_74, %c0_75] : memref<2x32x96xf32, #tpu.memory_space<vmem>>, vector<1x32x96xf32>
    %125 = vector.shape_cast %124 : vector<1x32x96xf32> to vector<32x96xf32>
    %c1_76 = arith.constant 1 : index
    %c0_77 = arith.constant 0 : index
    %c0_78 = arith.constant 0 : index
    %126 = vector.load %arg6[%c1_76, %c0_77, %c0_78] : memref<2x1x96xf32, #tpu.memory_space<vmem>>, vector<1x1x96xf32>
    %127 = vector.shape_cast %126 : vector<1x1x96xf32> to vector<1x96xf32>
    %c1_79 = arith.constant 1 : index
    %c0_80 = arith.constant 0 : index
    %c0_81 = arith.constant 0 : index
    %128 = vector.load %arg7[%c1_79, %c0_80, %c0_81] : memref<2x32x32xf32, #tpu.memory_space<vmem>>, vector<1x32x32xf32>
    %129 = vector.shape_cast %128 : vector<1x32x32xf32> to vector<32x32xf32>
    %c1_82 = arith.constant 1 : index
    %c0_83 = arith.constant 0 : index
    %c0_84 = arith.constant 0 : index
    %130 = vector.load %arg8[%c1_82, %c0_83, %c0_84] : memref<2x1x32xf32, #tpu.memory_space<vmem>>, vector<1x1x32xf32>
    %131 = vector.shape_cast %130 : vector<1x1x32xf32> to vector<1x32xf32>
    %c1_85 = arith.constant 1 : index
    %c0_86 = arith.constant 0 : index
    %c0_87 = arith.constant 0 : index
    %132 = vector.load %arg11[%c1_85, %c0_86, %c0_87] : memref<2x32x128xf32, #tpu.memory_space<vmem>>, vector<1x32x128xf32>
    %133 = vector.shape_cast %132 : vector<1x32x128xf32> to vector<32x128xf32>
    %c1_88 = arith.constant 1 : index
    %c0_89 = arith.constant 0 : index
    %c0_90 = arith.constant 0 : index
    %134 = vector.load %arg12[%c1_88, %c0_89, %c0_90] : memref<2x1x128xf32, #tpu.memory_space<vmem>>, vector<1x1x128xf32>
    %135 = vector.shape_cast %134 : vector<1x1x128xf32> to vector<1x128xf32>
    %c1_91 = arith.constant 1 : index
    %c0_92 = arith.constant 0 : index
    %c0_93 = arith.constant 0 : index
    %136 = vector.load %arg13[%c1_91, %c0_92, %c0_93] : memref<2x128x32xf32, #tpu.memory_space<vmem>>, vector<1x128x32xf32>
    %137 = vector.shape_cast %136 : vector<1x128x32xf32> to vector<128x32xf32>
    %c1_94 = arith.constant 1 : index
    %c0_95 = arith.constant 0 : index
    %c0_96 = arith.constant 0 : index
    %138 = vector.load %arg14[%c1_94, %c0_95, %c0_96] : memref<2x1x32xf32, #tpu.memory_space<vmem>>, vector<1x1x32xf32>
    %139 = vector.shape_cast %138 : vector<1x1x32xf32> to vector<1x32xf32>
    %cst_97 = arith.constant dense<0.000000e+00> : vector<16xf32>
    %140 = vector.multi_reduction <add>, %115, %cst_97 [1] : vector<16x32xf32> to vector<16xf32>
    %141 = vector.shape_cast %140 : vector<16xf32> to vector<16x1xf32>
    %cst_98 = arith.constant 3.200000e+01 : f32
    %142 = vector.broadcast %cst_98 : f32 to vector<16x1xf32>
    %143 = arith.divf %141, %142 : vector<16x1xf32>
    %144 = arith.mulf %115, %115 : vector<16x32xf32>
    %cst_99 = arith.constant dense<0.000000e+00> : vector<16xf32>
    %145 = vector.multi_reduction <add>, %144, %cst_99 [1] : vector<16x32xf32> to vector<16xf32>
    %146 = vector.shape_cast %145 : vector<16xf32> to vector<16x1xf32>
    %cst_100 = arith.constant 3.200000e+01 : f32
    %147 = vector.broadcast %cst_100 : f32 to vector<16x1xf32>
    %148 = arith.divf %146, %147 : vector<16x1xf32>
    %149 = arith.mulf %143, %143 : vector<16x1xf32>
    %150 = arith.subf %148, %149 : vector<16x1xf32>
    %151 = vector.broadcast %143 : vector<16x1xf32> to vector<16x32xf32>
    %152 = arith.subf %115, %151 : vector<16x32xf32>
    %cst_101 = arith.constant 9.99999997E-7 : f32
    %153 = vector.broadcast %cst_101 : f32 to vector<16x1xf32>
    %154 = arith.addf %150, %153 : vector<16x1xf32>
    %155 = math.rsqrt %154 : vector<16x1xf32>
    %156 = vector.broadcast %155 : vector<16x1xf32> to vector<16x32xf32>
    %157 = arith.mulf %152, %156 : vector<16x32xf32>
    %158 = vector.broadcast %117 : vector<1x32xf32> to vector<16x32xf32>
    %159 = arith.mulf %157, %158 : vector<16x32xf32>
    %160 = vector.broadcast %119 : vector<1x32xf32> to vector<16x32xf32>
    %161 = arith.addf %159, %160 : vector<16x32xf32>
    %cst_102 = arith.constant dense<0.000000e+00> : vector<16x96xf32>
    %162 = tpu.matmul %161, %125, %cst_102 {dimension_numbers = #tpu.dot_dimension_numbers<[1], [0], [0], [1], [0, 0, 1, 1], [], []>} : vector<16x32xf32>, vector<32x96xf32>, vector<16x96xf32> -> vector<16x96xf32>
    %163 = vector.broadcast %127 : vector<1x96xf32> to vector<16x96xf32>
    %164 = arith.addf %162, %163 : vector<16x96xf32>
    %165 = vector.extract_strided_slice %164 {offsets = [0, 0], sizes = [16, 32], strides = [1, 1]} : vector<16x96xf32> to vector<16x32xf32>
    %166 = vector.extract_strided_slice %164 {offsets = [0, 32], sizes = [16, 32], strides = [1, 1]} : vector<16x96xf32> to vector<16x32xf32>
    %167 = vector.extract_strided_slice %164 {offsets = [0, 64], sizes = [16, 32], strides = [1, 1]} : vector<16x96xf32> to vector<16x32xf32>
    %168 = tpu.concatenate %166, %166, %166, %166 in 0 : vector<16x32xf32>, vector<16x32xf32>, vector<16x32xf32>, vector<16x32xf32> -> vector<64x32xf32>
    %169 = arith.mulf %168, %2 : vector<64x32xf32>
    %170 = tpu.concatenate %167, %167, %167, %167 in 0 : vector<16x32xf32>, vector<16x32xf32>, vector<16x32xf32>, vector<16x32xf32> -> vector<64x32xf32>
    %171 = arith.mulf %170, %2 : vector<64x32xf32>
    %cst_103 = arith.constant dense<0.000000e+00> : vector<16x64xf32>
    %172 = tpu.matmul %165, %169, %cst_103 {dimension_numbers = #tpu.dot_dimension_numbers<[1], [1], [0], [0], [0, 0, 1, 0], [], []>} : vector<16x32xf32>, vector<64x32xf32>, vector<16x64xf32> -> vector<16x64xf32>
    %173 = arith.addf %172, %1 : vector<16x64xf32>
    %cst_104 = arith.constant dense<0xFF800000> : vector<16xf32>
    %174 = vector.multi_reduction <maximumf>, %173, %cst_104 [1] : vector<16x64xf32> to vector<16xf32>
    %175 = vector.shape_cast %174 : vector<16xf32> to vector<16x1xf32>
    %176 = vector.broadcast %175 : vector<16x1xf32> to vector<16x64xf32>
    %177 = arith.subf %173, %176 : vector<16x64xf32>
    %178 = math.exp %177 : vector<16x64xf32>
    %cst_105 = arith.constant dense<0.000000e+00> : vector<16x32xf32>
    %179 = tpu.matmul %178, %171, %cst_105 {dimension_numbers = #tpu.dot_dimension_numbers<[1], [0], [0], [1], [0, 0, 1, 1], [], []>} : vector<16x64xf32>, vector<64x32xf32>, vector<16x32xf32> -> vector<16x32xf32>
    %cst_106 = arith.constant dense<0.000000e+00> : vector<16x32xf32>
    %180 = tpu.matmul %178, %2, %cst_106 {dimension_numbers = #tpu.dot_dimension_numbers<[1], [0], [0], [1], [0, 0, 1, 1], [], []>} : vector<16x64xf32>, vector<64x32xf32>, vector<16x32xf32> -> vector<16x32xf32>
    %181 = tpu.reciprocal %180 : vector<16x32xf32> -> vector<16x32xf32>
    %182 = arith.mulf %179, %181 : vector<16x32xf32>
    %cst_107 = arith.constant dense<0.000000e+00> : vector<16x32xf32>
    %183 = tpu.matmul %182, %129, %cst_107 {dimension_numbers = #tpu.dot_dimension_numbers<[1], [0], [0], [1], [0, 0, 1, 1], [], []>} : vector<16x32xf32>, vector<32x32xf32>, vector<16x32xf32> -> vector<16x32xf32>
    %184 = arith.addf %115, %183 : vector<16x32xf32>
    %185 = vector.broadcast %131 : vector<1x32xf32> to vector<16x32xf32>
    %186 = arith.addf %184, %185 : vector<16x32xf32>
    %cst_108 = arith.constant dense<0.000000e+00> : vector<16xf32>
    %187 = vector.multi_reduction <add>, %186, %cst_108 [1] : vector<16x32xf32> to vector<16xf32>
    %188 = vector.shape_cast %187 : vector<16xf32> to vector<16x1xf32>
    %cst_109 = arith.constant 3.200000e+01 : f32
    %189 = vector.broadcast %cst_109 : f32 to vector<16x1xf32>
    %190 = arith.divf %188, %189 : vector<16x1xf32>
    %191 = arith.mulf %186, %186 : vector<16x32xf32>
    %cst_110 = arith.constant dense<0.000000e+00> : vector<16xf32>
    %192 = vector.multi_reduction <add>, %191, %cst_110 [1] : vector<16x32xf32> to vector<16xf32>
    %193 = vector.shape_cast %192 : vector<16xf32> to vector<16x1xf32>
    %cst_111 = arith.constant 3.200000e+01 : f32
    %194 = vector.broadcast %cst_111 : f32 to vector<16x1xf32>
    %195 = arith.divf %193, %194 : vector<16x1xf32>
    %196 = arith.mulf %190, %190 : vector<16x1xf32>
    %197 = arith.subf %195, %196 : vector<16x1xf32>
    %198 = vector.broadcast %190 : vector<16x1xf32> to vector<16x32xf32>
    %199 = arith.subf %186, %198 : vector<16x32xf32>
    %cst_112 = arith.constant 9.99999997E-7 : f32
    %200 = vector.broadcast %cst_112 : f32 to vector<16x1xf32>
    %201 = arith.addf %197, %200 : vector<16x1xf32>
    %202 = math.rsqrt %201 : vector<16x1xf32>
    %203 = vector.broadcast %202 : vector<16x1xf32> to vector<16x32xf32>
    %204 = arith.mulf %199, %203 : vector<16x32xf32>
    %205 = vector.broadcast %121 : vector<1x32xf32> to vector<16x32xf32>
    %206 = arith.mulf %204, %205 : vector<16x32xf32>
    %207 = vector.broadcast %123 : vector<1x32xf32> to vector<16x32xf32>
    %208 = arith.addf %206, %207 : vector<16x32xf32>
    %cst_113 = arith.constant dense<0.000000e+00> : vector<16x128xf32>
    %209 = tpu.matmul %208, %133, %cst_113 {dimension_numbers = #tpu.dot_dimension_numbers<[1], [0], [0], [1], [0, 0, 1, 1], [], []>} : vector<16x32xf32>, vector<32x128xf32>, vector<16x128xf32> -> vector<16x128xf32>
    %210 = vector.broadcast %135 : vector<1x128xf32> to vector<16x128xf32>
    %211 = arith.addf %209, %210 : vector<16x128xf32>
    %cst_114 = arith.constant 5.000000e-01 : f32
    %212 = vector.broadcast %cst_114 : f32 to vector<16x128xf32>
    %213 = arith.mulf %212, %211 : vector<16x128xf32>
    %cst_115 = arith.constant 4.471500e-02 : f32
    %214 = vector.broadcast %cst_115 : f32 to vector<16x128xf32>
    %215 = arith.mulf %214, %211 : vector<16x128xf32>
    %216 = arith.mulf %215, %211 : vector<16x128xf32>
    %217 = arith.mulf %216, %211 : vector<16x128xf32>
    %218 = arith.addf %211, %217 : vector<16x128xf32>
    %cst_116 = arith.constant 0.797884583 : f32
    %219 = vector.broadcast %cst_116 : f32 to vector<16x128xf32>
    %220 = arith.mulf %219, %218 : vector<16x128xf32>
    %221 = math.tanh %220 : vector<16x128xf32>
    %cst_117 = arith.constant 1.000000e+00 : f32
    %222 = vector.broadcast %cst_117 : f32 to vector<16x128xf32>
    %223 = arith.addf %222, %221 : vector<16x128xf32>
    %224 = arith.mulf %213, %223 : vector<16x128xf32>
    %cst_118 = arith.constant dense<0.000000e+00> : vector<16x32xf32>
    %225 = tpu.matmul %224, %137, %cst_118 {dimension_numbers = #tpu.dot_dimension_numbers<[1], [0], [0], [1], [0, 0, 1, 1], [], []>} : vector<16x128xf32>, vector<128x32xf32>, vector<16x32xf32> -> vector<16x32xf32>
    %226 = arith.addf %186, %225 : vector<16x32xf32>
    %227 = vector.broadcast %139 : vector<1x32xf32> to vector<16x32xf32>
    %228 = arith.addf %226, %227 : vector<16x32xf32>
    %c0_119 = arith.constant 0 : index
    %c0_120 = arith.constant 0 : index
    %229 = vector.load %arg15[%c0_119, %c0_120] : memref<1x32xf32, #tpu.memory_space<vmem>>, vector<1x32xf32>
    %c0_121 = arith.constant 0 : index
    %c0_122 = arith.constant 0 : index
    %230 = vector.load %arg16[%c0_121, %c0_122] : memref<1x32xf32, #tpu.memory_space<vmem>>, vector<1x32xf32>
    %cst_123 = arith.constant dense<0.000000e+00> : vector<16xf32>
    %231 = vector.multi_reduction <add>, %228, %cst_123 [1] : vector<16x32xf32> to vector<16xf32>
    %232 = vector.shape_cast %231 : vector<16xf32> to vector<16x1xf32>
    %cst_124 = arith.constant 3.200000e+01 : f32
    %233 = vector.broadcast %cst_124 : f32 to vector<16x1xf32>
    %234 = arith.divf %232, %233 : vector<16x1xf32>
    %235 = arith.mulf %228, %228 : vector<16x32xf32>
    %cst_125 = arith.constant dense<0.000000e+00> : vector<16xf32>
    %236 = vector.multi_reduction <add>, %235, %cst_125 [1] : vector<16x32xf32> to vector<16xf32>
    %237 = vector.shape_cast %236 : vector<16xf32> to vector<16x1xf32>
    %cst_126 = arith.constant 3.200000e+01 : f32
    %238 = vector.broadcast %cst_126 : f32 to vector<16x1xf32>
    %239 = arith.divf %237, %238 : vector<16x1xf32>
    %240 = arith.mulf %234, %234 : vector<16x1xf32>
    %241 = arith.subf %239, %240 : vector<16x1xf32>
    %242 = vector.broadcast %234 : vector<16x1xf32> to vector<16x32xf32>
    %243 = arith.subf %228, %242 : vector<16x32xf32>
    %cst_127 = arith.constant 9.99999997E-7 : f32
    %244 = vector.broadcast %cst_127 : f32 to vector<16x1xf32>
    %245 = arith.addf %241, %244 : vector<16x1xf32>
    %246 = math.rsqrt %245 : vector<16x1xf32>
    %247 = vector.broadcast %246 : vector<16x1xf32> to vector<16x32xf32>
    %248 = arith.mulf %243, %247 : vector<16x32xf32>
    %249 = vector.broadcast %229 : vector<1x32xf32> to vector<16x32xf32>
    %250 = arith.mulf %248, %249 : vector<16x32xf32>
    %251 = vector.broadcast %230 : vector<1x32xf32> to vector<16x32xf32>
    %252 = arith.addf %250, %251 : vector<16x32xf32>
    %c0_128 = arith.constant 0 : index
    %c0_129 = arith.constant 0 : index
    %253 = vector.load %arg17[%c0_128, %c0_129] : memref<16x32xf32, #tpu.memory_space<vmem>>, vector<16x32xf32>
    tpu.vector_store %arg17[%c0_128, %c0_129], %252 {strides = array<i32>} : memref<16x32xf32, #tpu.memory_space<vmem>>, vector<16x32xf32>,
    return
  }
}

</mosaic_0001>

<llo_original>
// kernel: encoder_forward.1
$region0: #{encoder_forward.1}
  #allocation0 [shape = 'u32[]', space=smem, size = 0x4, offset = 0x4, fixed_abs, tag = 'smem constant byte address 0x4 - core index']
  #allocation1 [shape = 'u32[72,128]{1,0:T(1,128)}', space=vmem, size = 0x9000, scoped, tag = 'internal scratch']
  %s0 = inlined_call_operand.vmem [shape: f32[16,32], index: 0, kind: input, shape index: {}]
  %s1 = inlined_call_operand.vmem [shape: f32[16,64], index: 1, kind: input, shape index: {}]
  %s2 = inlined_call_operand.vmem [shape: f32[64,32], index: 2, kind: input, shape index: {}]
  %s3 = inlined_call_operand.vmem [shape: f32[2,1,32], index: 3, kind: input, shape index: {}]
  %s4 = inlined_call_operand.vmem [shape: f32[2,1,32], index: 4, kind: input, shape index: {}]
  %s5 = inlined_call_operand.vmem [shape: f32[2,32,96], index: 5, kind: input, shape index: {}]
  %s6 = inlined_call_operand.vmem [shape: f32[2,1,96], index: 6, kind: input, shape index: {}]
  %s7 = inlined_call_operand.vmem [shape: f32[2,32,32], index: 7, kind: input, shape index: {}]
  %s8 = inlined_call_operand.vmem [shape: f32[2,1,32], index: 8, kind: input, shape index: {}]
  %s9 = inlined_call_operand.vmem [shape: f32[2,1,32], index: 9, kind: input, shape index: {}]
  %s10 = inlined_call_operand.vmem [shape: f32[2,1,32], index: 10, kind: input, shape index: {}]
  %s11 = inlined_call_operand.vmem [shape: f32[2,32,128], index: 11, kind: input, shape index: {}]
  %s12 = inlined_call_operand.vmem [shape: f32[2,1,128], index: 12, kind: input, shape index: {}]
  %s13 = inlined_call_operand.vmem [shape: f32[2,128,32], index: 13, kind: input, shape index: {}]
  %s14 = inlined_call_operand.vmem [shape: f32[2,1,32], index: 14, kind: input, shape index: {}]
  %s15 = inlined_call_operand.vmem [shape: f32[1,32], index: 15, kind: input, shape index: {}]
  %s16 = inlined_call_operand.vmem [shape: f32[1,32], index: 16, kind: input, shape index: {}]
  %s17 = inlined_call_operand.hbm [shape: f32[16,32], index: 17, kind: output, shape index: {}]
  %s18 = sld [smem:[#allocation0]]
  $region78: #{encoder_forward.1} parent=0
    _
  %s20 = ssub.s32 1, %s18
  %s21 = scalar_select 0, %s20, %s18
  $region1: #{encoder_forward.1} parent=0
    #allocation2 [shape = 'u8[8192]{0}', space=vmem, size = 0x2000, scoped, tag = 'output window, operand 0, single buffered']
    #allocation3 [shape = 's32[1]{0}', space=sflag, size = 0x4, scoped, tag = 'scoped memory for encoder_forward.1']
    %22 = vsyncpa [#allocation3], 0
    // Predicated region
    $region2: #{encoder_forward.1} parent=1 // pred_check
      _
    $region3: #{encoder_forward.1} parent=1 // pred_check_branch
      %24 = sbr.rel (0) target = $region5
    $region4: #{encoder_forward.1} parent=1 // pred_region
      _
    $region5: #{encoder_forward.1} parent=1 // pred_fallthru
      _
    // Predicated region
    $region6: #{encoder_forward.1} parent=1 // pred_check
      _
    $region7: #{encoder_forward.1} parent=1 // pred_check_branch
      %26 = sbr.rel (0) target = $region9
    $region8: #{encoder_forward.1} parent=1 // pred_region
      _
    $region9: #{encoder_forward.1} parent=1 // pred_fallthru
      _
    // Predicated region
    $region10: #{encoder_forward.1} parent=1 // pred_check
      _
    $region11: #{encoder_forward.1} parent=1 // pred_check_branch
      %28 = sbr.rel (0) target = $region13
    $region12: #{encoder_forward.1} parent=1 // pred_region
      _
    $region13: #{encoder_forward.1} parent=1 // pred_fallthru
      _
    // Predicated region
    $region14: #{encoder_forward.1} parent=1 // pred_check
      _
    $region15: #{encoder_forward.1} parent=1 // pred_check_branch
      %30 = sbr.rel (0) target = $region17
    $region16: #{encoder_forward.1} parent=1 // pred_region
      _
    $region17: #{encoder_forward.1} parent=1 // pred_fallthru
      _
    // Predicated region
    $region18: #{encoder_forward.1} parent=1 // pred_check
      _
    $region19: #{encoder_forward.1} parent=1 // pred_check_branch
      %32 = sbr.rel (0) target = $region21
    $region20: #{encoder_forward.1} parent=1 // pred_region
      _
    $region21: #{encoder_forward.1} parent=1 // pred_fallthru
      _
    // Predicated region
    $region22: #{encoder_forward.1} parent=1 // pred_check
      _
    $region23: #{encoder_forward.1} parent=1 // pred_check_branch
      %34 = sbr.rel (0) target = $region25
    $region24: #{encoder_forward.1} parent=1 // pred_region
      _
    $region25: #{encoder_forward.1} parent=1 // pred_fallthru
      _
    // Predicated region
    $region26: #{encoder_forward.1} parent=1 // pred_check
      _
    $region27: #{encoder_forward.1} parent=1 // pred_check_branch
      %36 = sbr.rel (0) target = $region29
    $region28: #{encoder_forward.1} parent=1 // pred_region
      _
    $region29: #{encoder_forward.1} parent=1 // pred_fallthru
      _
    // Predicated region
    $region30: #{encoder_forward.1} parent=1 // pred_check
      _
    $region31: #{encoder_forward.1} parent=1 // pred_check_branch
      %38 = sbr.rel (0) target = $region33
    $region32: #{encoder_forward.1} parent=1 // pred_region
      _
    $region33: #{encoder_forward.1} parent=1 // pred_fallthru
      _
    // Predicated region
    $region34: #{encoder_forward.1} parent=1 // pred_check
      _
    $region35: #{encoder_forward.1} parent=1 // pred_check_branch
      %40 = sbr.rel (0) target = $region37
    $region36: #{encoder_forward.1} parent=1 // pred_region
      _
    $region37: #{encoder_forward.1} parent=1 // pred_fallthru
      _
    // Predicated region
    $region38: #{encoder_forward.1} parent=1 // pred_check
      _
    $region39: #{encoder_forward.1} parent=1 // pred_check_branch
      %42 = sbr.rel (0) target = $region41
    $region40: #{encoder_forward.1} parent=1 // pred_region
      _
    $region41: #{encoder_forward.1} parent=1 // pred_fallthru
      _
    // Predicated region
    $region42: #{encoder_forward.1} parent=1 // pred_check
      _
    $region43: #{encoder_forward.1} parent=1 // pred_check_branch
      %44 = sbr.rel (0) target = $region45
    $region44: #{encoder_forward.1} parent=1 // pred_region
      _
    $region45: #{encoder_forward.1} parent=1 // pred_fallthru
      _
    // Predicated region
    $region46: #{encoder_forward.1} parent=1 // pred_check
      _
    $region47: #{encoder_forward.1} parent=1 // pred_check_branch
      %46 = sbr.rel (0) target = $region49
    $region48: #{encoder_forward.1} parent=1 // pred_region
      _
    $region49: #{encoder_forward.1} parent=1 // pred_fallthru
      _
    // Predicated region
    $region50: #{encoder_forward.1} parent=1 // pred_check
      _
    $region51: #{encoder_forward.1} parent=1 // pred_check_branch
      %48 = sbr.rel (0) target = $region53
    $region52: #{encoder_forward.1} parent=1 // pred_region
      _
    $region53: #{encoder_forward.1} parent=1 // pred_fallthru
      _
    // Predicated region
    $region54: #{encoder_forward.1} parent=1 // pred_check
      _
    $region55: #{encoder_forward.1} parent=1 // pred_check_branch
      %50 = sbr.rel (0) target = $region57
    $region56: #{encoder_forward.1} parent=1 // pred_region
      _
    $region57: #{encoder_forward.1} parent=1 // pred_fallthru
      _
    // Predicated region
    $region58: #{encoder_forward.1} parent=1 // pred_check
      _
    $region59: #{encoder_forward.1} parent=1 // pred_check_branch
      %52 = sbr.rel (0) target = $region61
    $region60: #{encoder_forward.1} parent=1 // pred_region
      _
    $region61: #{encoder_forward.1} parent=1 // pred_fallthru
      _
    // Predicated region
    $region62: #{encoder_forward.1} parent=1 // pred_check
      _
    $region63: #{encoder_forward.1} parent=1 // pred_check_branch
      %54 = sbr.rel (0) target = $region65
    $region64: #{encoder_forward.1} parent=1 // pred_region
      _
    $region65: #{encoder_forward.1} parent=1 // pred_fallthru
      _
    // Predicated region
    $region66: #{encoder_forward.1} parent=1 // pred_check
      _
    $region67: #{encoder_forward.1} parent=1 // pred_check_branch
      %56 = sbr.rel (0) target = $region69
    $region68: #{encoder_forward.1} parent=1 // pred_region
      _
    $region69: #{encoder_forward.1} parent=1 // pred_fallthru
      _
    %v57 = vld [vmem:[%s0] sm:$0xff]
    %v58 = vld [vmem:[%s0 + $0x8] sm:$0xff]
    %v59 = vld [vmem:[%s1] sm:$0xff]
    %v60 = vld [vmem:[%s1 + $0x8] sm:$0xff]
    %v61 = vld [vmem:[%s2] sm:$0xff]
    %v62 = vld [vmem:[%s2 + $0x8] sm:$0xff]
    %v63 = vld [vmem:[%s2 + $0x10] sm:$0xff]
    %v64 = vld [vmem:[%s2 + $0x18] sm:$0xff]
    %v65 = vld [vmem:[%s2 + $0x20] sm:$0xff]
    %v66 = vld [vmem:[%s2 + $0x28] sm:$0xff]
    %v67 = vld [vmem:[%s2 + $0x30] sm:$0xff]
    %v68 = vld [vmem:[%s2 + $0x38] sm:$0xff]
    %v69 = vld [vmem:[%s3] sm:$0x1]
    %v70 = vld [vmem:[%s4] sm:$0x1]
    %v71 = vld [vmem:[%s9] sm:$0x1]
    %v72 = vld [vmem:[%s10] sm:$0x1]
    %v73 = vld [vmem:[%s5] sm:$0xff]
    %v74 = vld [vmem:[%s5 + $0x8] sm:$0xff]
    %v75 = vld [vmem:[%s5 + $0x10] sm:$0xff]
    %v76 = vld [vmem:[%s5 + $0x18] sm:$0xff]
    %v77 = vld [vmem:[%s6] sm:$0x1]
    %v78 = vld [vmem:[%s7] sm:$0xff]
    %v79 = vld [vmem:[%s7 + $0x8] sm:$0xff]
    %v80 = vld [vmem:[%s7 + $0x10] sm:$0xff]
    %v81 = vld [vmem:[%s7 + $0x18] sm:$0xff]
    %v82 = vld [vmem:[%s8] sm:$0x1]
    %v83 = vld [vmem:[%s11] sm:$0xff]
    %v84 = vld [vmem:[%s11 + $0x8] sm:$0xff]
    %v85 = vld [vmem:[%s11 + $0x10] sm:$0xff]
    %v86 = vld [vmem:[%s11 + $0x18] sm:$0xff]
    %v87 = vld [vmem:[%s12] sm:$0x1]
    %v88 = vld [vmem:[%s13] sm:$0xff]
    %v89 = vld [vmem:[%s13 + $0x8] sm:$0xff]
    %v90 = vld [vmem:[%s13 + $0x10] sm:$0xff]
    %v91 = vld [vmem:[%s13 + $0x18] sm:$0xff]
    %v92 = vld [vmem:[%s13 + $0x20] sm:$0xff]
    %v93 = vld [vmem:[%s13 + $0x28] sm:$0xff]
    %v94 = vld [vmem:[%s13 + $0x30] sm:$0xff]
    %v95 = vld [vmem:[%s13 + $0x38] sm:$0xff]
    %v96 = vld [vmem:[%s13 + $0x40] sm:$0xff]
    %v97 = vld [vmem:[%s13 + $0x48] sm:$0xff]
    %v98 = vld [vmem:[%s13 + $0x50] sm:$0xff]
    %v99 = vld [vmem:[%s13 + $0x58] sm:$0xff]
    %v100 = vld [vmem:[%s13 + $0x60] sm:$0xff]
    %v101 = vld [vmem:[%s13 + $0x68] sm:$0xff]
    %v102 = vld [vmem:[%s13 + $0x70] sm:$0xff]
    %v103 = vld [vmem:[%s13 + $0x78] sm:$0xff]
    %v104 = vld [vmem:[%s14] sm:$0x1]
    %vm105 = vcmask 261120
    %v106 = vsel %vm105, %v57, 0.0
    %107 = vadd.xlane.f32.xlu0 %v106
    %v108 = vpop.xlane.xlu0 %107
    %v109 = vsel %vm105, %v58, 0.0
    %110 = vadd.xlane.f32.xlu0 %v109
    %v111 = vpop.xlane.xlu0 %110
    %v112 = vrcp.pop 32.0
    %v113 = vmul.f32 32.0, %v112
    %v114 = vsub.f32 1.0, %v113
    %v115 = vmul.f32 %v112, %v114
    %v116 = vadd.f32 %v112, %v115
    %vm117 = vweird.f32 %v112
    %v118 = vsel %vm117, %v112, %v116
    %v119 = vmul.f32 %v108, %v118
    %v120 = vmul.f32 %v111, %v118
    %v121 = vmul.f32 %v57, %v57
    %v122 = vmul.f32 %v58, %v58
    %v123 = vsel %vm105, %v121, 0.0
    %124 = vadd.xlane.f32.xlu0 %v123
    %v125 = vpop.xlane.xlu0 %124
    %v126 = vsel %vm105, %v122, 0.0
    %127 = vadd.xlane.f32.xlu0 %v126
    %v128 = vpop.xlane.xlu0 %127
    %v129 = vmul.f32 %v125, %v118
    %v130 = vmul.f32 %v128, %v118
    %v131 = vmul.f32 %v119, %v119
    %v132 = vmul.f32 %v120, %v120
    %v133 = vsub.f32 %v129, %v131
    %v134 = vsub.f32 %v130, %v132
    %v135 = vsub.f32 %v57, %v119
    %v136 = vsub.f32 %v58, %v120
    %v137 = vadd.f32 %v133, 1e-06
    %v138 = vadd.f32 %v134, 1e-06
    %v139 = vrsqrt.pop %v137
    %v140 = vmul.f32 %v139, %v137
    %v141 = vmul.f32 %v140, %v139
    %v142 = vmul.f32 0.5, %v141
    %v143 = vsub.f32 1.5, %v142
    %v144 = vmul.f32 %v139, %v143
    %vm145 = vweird.f32 %v137
    %vm146 = vweird.f32 %v139
    %vm147 = vmor %vm145, %vm146
    %v148 = vsel %vm147, %v139, %v144
    %v149 = vrsqrt.pop %v138
    %v150 = vmul.f32 %v149, %v138
    %v151 = vmul.f32 %v150, %v149
    %v152 = vmul.f32 0.5, %v151
    %v153 = vsub.f32 1.5, %v152
    %v154 = vmul.f32 %v149, %v153
    %vm155 = vweird.f32 %v138
    %vm156 = vweird.f32 %v149
    %vm157 = vmor %vm155, %vm156
    %v158 = vsel %vm157, %v149, %v154
    %v159 = vmul.f32 %v135, %v148
    %v160 = vmul.f32 %v136, %v158
    %v162 = vperm.slane %v69, 0
    %v164 = vmul.f32 %v159, %v162
    %v165 = vmul.f32 %v160, %v162
    %v167 = vperm.slane %v70, 0
    %v169 = vadd.f32 %v164, %v167
    %v170 = vadd.f32 %v165, %v167
    %v172 = vperm.slane %v77, 0
    %v175 = vsel %vm105, %v169, 0
    %v178 = vsel %vm105, %v170, 0
    %180 = vmatpush.msra.mxu0 0.0
    %181 = vmatpush.msra.mxu0 0.0
    %182 = vmatpush.msra.mxu0 0.0
    %183 = vmatpush.msra.mxu0 0.0
    %184 = vmatpush.msra.mxu0 0.0
    %185 = vmatpush.msra.mxu0 0.0
    %186 = vmatpush.msra.mxu0 0.0
    %187 = vmatpush.msra.mxu0 0.0
    %188 = vmatpush.msra.mxu0 0.0
    %189 = vmatpush.msra.mxu0 0.0
    %190 = vmatpush.msra.mxu0 0.0
    %191 = vmatpush.msra.mxu0 0.0
    %192 = vmatpush.msra.mxu0 %v76
    %193 = vmatpush.msra.mxu0 %v75
    %194 = vmatpush.msra.mxu0 %v74
    %195 = vmatpush.msra.mxu0 %v73
    %196 = vmatmul.f32.gmra.mxu0 %v175
    %v197 = vpop.f32.mrf.mxu0
    %v198 = vadd.f32 %v172, %v197
    %199 = vmatmul.f32.gmra.mxu0 %v178
    %v200 = vpop.f32.mrf.mxu0
    %v201 = vadd.f32 %v172, %v200
    %202 = vdwg.mxu0
    %211 = vrot.lane.b32.xlu0 %v61, 32
    %v212 = vpop.permute.xlu0 %211
    %213 = vrot.lane.b32.xlu0 %v62, 32
    %v214 = vpop.permute.xlu0 %213
    %215 = vrot.lane.b32.xlu0 %v63, 32
    %v216 = vpop.permute.xlu0 %215
    %217 = vrot.lane.b32.xlu0 %v64, 32
    %v218 = vpop.permute.xlu0 %217
    %219 = vrot.lane.b32.xlu0 %v65, 32
    %v220 = vpop.permute.xlu0 %219
    %221 = vrot.lane.b32.xlu0 %v66, 32
    %v222 = vpop.permute.xlu0 %221
    %223 = vrot.lane.b32.xlu0 %v67, 32
    %v224 = vpop.permute.xlu0 %223
    %225 = vrot.lane.b32.xlu0 %v68, 32
    %v226 = vpop.permute.xlu0 %225
    %v235 = vmul.f32 %v198, %v212
    %v236 = vmul.f32 %v201, %v214
    %v237 = vmul.f32 %v198, %v216
    %v238 = vmul.f32 %v201, %v218
    %v239 = vmul.f32 %v198, %v220
    %v240 = vmul.f32 %v201, %v222
    %v241 = vmul.f32 %v198, %v224
    %v242 = vmul.f32 %v201, %v226
    %243 = vrot.lane.b32.xlu0 %v61, 64
    %v244 = vpop.permute.xlu0 %243
    %245 = vrot.lane.b32.xlu0 %v62, 64
    %v246 = vpop.permute.xlu0 %245
    %247 = vrot.lane.b32.xlu0 %v63, 64
    %v248 = vpop.permute.xlu0 %247
    %249 = vrot.lane.b32.xlu0 %v64, 64
    %v250 = vpop.permute.xlu0 %249
    %251 = vrot.lane.b32.xlu0 %v65, 64
    %v252 = vpop.permute.xlu0 %251
    %253 = vrot.lane.b32.xlu0 %v66, 64
    %v254 = vpop.permute.xlu0 %253
    %255 = vrot.lane.b32.xlu0 %v67, 64
    %v256 = vpop.permute.xlu0 %255
    %257 = vrot.lane.b32.xlu0 %v68, 64
    %v258 = vpop.permute.xlu0 %257
    %v267 = vmul.f32 %v198, %v244
    %v268 = vmul.f32 %v201, %v246
    %v269 = vmul.f32 %v198, %v248
    %v270 = vmul.f32 %v201, %v250
    %v271 = vmul.f32 %v198, %v252
    %v272 = vmul.f32 %v201, %v254
    %v273 = vmul.f32 %v198, %v256
    %v274 = vmul.f32 %v201, %v258
    %283 = vrot.lane.b32.xlu0 %v235, 96
    %v284 = vpop.permute.xlu0 %283
    %285 = vrot.lane.b32.xlu0 %v236, 96
    %v286 = vpop.permute.xlu0 %285
    %287 = vrot.lane.b32.xlu0 %v237, 96
    %v288 = vpop.permute.xlu0 %287
    %289 = vrot.lane.b32.xlu0 %v238, 96
    %v290 = vpop.permute.xlu0 %289
    %291 = vrot.lane.b32.xlu0 %v239, 96
    %v292 = vpop.permute.xlu0 %291
    %293 = vrot.lane.b32.xlu0 %v240, 96
    %v294 = vpop.permute.xlu0 %293
    %295 = vrot.lane.b32.xlu0 %v241, 96
    %v296 = vpop.permute.xlu0 %295
    %297 = vrot.lane.b32.xlu0 %v242, 96
    %v298 = vpop.permute.xlu0 %297
    %v300 = vsel %vm105, %v198, 0
    %v303 = vsel %vm105, %v201, 0
    %v305 = vsel %vm105, %v284, 0
    %v307 = vsel %vm105, %v286, 0
    %v309 = vsel %vm105, %v288, 0
    %v311 = vsel %vm105, %v290, 0
    %v313 = vsel %vm105, %v292, 0
    %v315 = vsel %vm105, %v294, 0
    %v317 = vsel %vm105, %v296, 0
    %v319 = vsel %vm105, %v298, 0
    %321 = vmatpush.xpose.msra.mxu0 0.0
    %322 = vmatpush.xpose.msra.mxu0 0.0
    %323 = vmatpush.xpose.msra.mxu0 0.0
    %324 = vmatpush.xpose.msra.mxu0 0.0
    %325 = vmatpush.xpose.msra.mxu0 0.0
    %326 = vmatpush.xpose.msra.mxu0 0.0
    %327 = vmatpush.xpose.msra.mxu0 0.0
    %328 = vmatpush.xpose.msra.mxu0 0.0
    %329 = vmatpush.xpose.msra.mxu0 %v319
    %330 = vmatpush.xpose.msra.mxu0 %v317
    %331 = vmatpush.xpose.msra.mxu0 %v315
    %332 = vmatpush.xpose.msra.mxu0 %v313
    %333 = vmatpush.xpose.msra.mxu0 %v311
    %334 = vmatpush.xpose.msra.mxu0 %v309
    %335 = vmatpush.xpose.msra.mxu0 %v307
    %336 = vmatpush.xpose.msra.mxu0 %v305
    %337 = vmatmul.f32.gmra.mxu0 %v300
    %v338 = vpop.f32.mrf.mxu0
    %v339 = vadd.f32 %v59, %v338
    %340 = vmatmul.f32.gmra.mxu0 %v303
    %v341 = vpop.f32.mrf.mxu0
    %v342 = vadd.f32 %v60, %v341
    %343 = vdwg.mxu0
    %vm344 = vcmask 523264
    %v345 = vsel %vm344, %v339, -inf
    %346 = vmax.xlane.f32.xlu0 %v345
    %v347 = vpop.xlane.xlu0 %346
    %v348 = vsel %vm344, %v342, -inf
    %349 = vmax.xlane.f32.xlu0 %v348
    %v350 = vpop.xlane.xlu0 %349
    %v351 = vsub.f32 %v339, %v347
    %v352 = vsub.f32 %v342, %v350
    %v353 = vmul.f32 %v351, 1.442695
    %v354 = vpow.pop %v353
    %v355 = vmul.f32 %v352, 1.442695
    %v356 = vpow.pop %v355
    %365 = vrot.lane.b32.xlu0 %v267, 64
    %v366 = vpop.permute.xlu0 %365
    %367 = vrot.lane.b32.xlu0 %v268, 64
    %v368 = vpop.permute.xlu0 %367
    %369 = vrot.lane.b32.xlu0 %v269, 64
    %v370 = vpop.permute.xlu0 %369
    %371 = vrot.lane.b32.xlu0 %v270, 64
    %v372 = vpop.permute.xlu0 %371
    %373 = vrot.lane.b32.xlu0 %v271, 64
    %v374 = vpop.permute.xlu0 %373
    %375 = vrot.lane.b32.xlu0 %v272, 64
    %v376 = vpop.permute.xlu0 %375
    %377 = vrot.lane.b32.xlu0 %v273, 64
    %v378 = vpop.permute.xlu0 %377
    %379 = vrot.lane.b32.xlu0 %v274, 64
    %v380 = vpop.permute.xlu0 %379
    %v390 = vsel %vm344, %v354, 0
    %v393 = vsel %vm344, %v356, 0
    %395 = vmatpush.msra.mxu0 0.0
    %396 = vmatpush.msra.mxu0 0.0
    %397 = vmatpush.msra.mxu0 0.0
    %398 = vmatpush.msra.mxu0 0.0
    %399 = vmatpush.msra.mxu0 0.0
    %400 = vmatpush.msra.mxu0 0.0
    %401 = vmatpush.msra.mxu0 0.0
    %402 = vmatpush.msra.mxu0 0.0
    %403 = vmatpush.msra.mxu0 %v380
    %404 = vmatpush.msra.mxu0 %v378
    %405 = vmatpush.msra.mxu0 %v376
    %406 = vmatpush.msra.mxu0 %v374
    %407 = vmatpush.msra.mxu0 %v372
    %408 = vmatpush.msra.mxu0 %v370
    %409 = vmatpush.msra.mxu0 %v368
    %410 = vmatpush.msra.mxu0 %v366
    %411 = vmatmul.f32.gmra.mxu0 %v390
    %v412 = vpop.f32.mrf.mxu0
    %v413 = vadd.f32 0.0, %v412
    %414 = vmatmul.f32.gmra.mxu0 %v393
    %v415 = vpop.f32.mrf.mxu0
    %v416 = vadd.f32 0.0, %v415
    %417 = vdwg.mxu0
    %418 = vmatpush.msra.mxu0 0.0
    %419 = vmatpush.msra.mxu0 0.0
    %420 = vmatpush.msra.mxu0 0.0
    %421 = vmatpush.msra.mxu0 0.0
    %422 = vmatpush.msra.mxu0 0.0
    %423 = vmatpush.msra.mxu0 0.0
    %424 = vmatpush.msra.mxu0 0.0
    %425 = vmatpush.msra.mxu0 0.0
    %426 = vmatpush.msra.mxu0 %v68
    %427 = vmatpush.msra.mxu0 %v67
    %428 = vmatpush.msra.mxu0 %v66
    %429 = vmatpush.msra.mxu0 %v65
    %430 = vmatpush.msra.mxu0 %v64
    %431 = vmatpush.msra.mxu0 %v63
    %432 = vmatpush.msra.mxu0 %v62
    %433 = vmatpush.msra.mxu0 %v61
    %434 = vmatmul.f32.gmra.mxu0 %v390
    %v435 = vpop.f32.mrf.mxu0
    %v436 = vadd.f32 0.0, %v435
    %437 = vmatmul.f32.gmra.mxu0 %v393
    %v438 = vpop.f32.mrf.mxu0
    %v439 = vadd.f32 0.0, %v438
    %440 = vdwg.mxu0
    %v441 = vrcp.pop %v436
    %v442 = vmul.f32 %v436, %v441
    %v443 = vsub.f32 1.0, %v442
    %v444 = vmul.f32 %v441, %v443
    %v445 = vadd.f32 %v441, %v444
    %vm446 = vweird.f32 %v436
    %vm447 = vweird.f32 %v441
    %vm448 = vmor %vm446, %vm447
    %v449 = vsel %vm448, %v441, %v445
    %v450 = vand.u32 2147483647, %v436
    %vm451 = vcmp.eq.f32.partialorder %v450, 8.507059e+37
    %v452 = vand.u32 %v436, 2147483648
    %v453 = vor.u32 1.1754944e-38, %v452
    %v454 = vsel %vm451, %v453, %v449
    %v455 = vrcp.pop %v439
    %v456 = vmul.f32 %v439, %v455
    %v457 = vsub.f32 1.0, %v456
    %v458 = vmul.f32 %v455, %v457
    %v459 = vadd.f32 %v455, %v458
    %vm460 = vweird.f32 %v439
    %vm461 = vweird.f32 %v455
    %vm462 = vmor %vm460, %vm461
    %v463 = vsel %vm462, %v455, %v459
    %v464 = vand.u32 2147483647, %v439
    %vm465 = vcmp.eq.f32.partialorder %v464, 8.507059e+37
    %v466 = vand.u32 %v439, 2147483648
    %v467 = vor.u32 1.1754944e-38, %v466
    %v468 = vsel %vm465, %v467, %v463
    %v469 = vmul.f32 %v413, %v454
    %v470 = vmul.f32 %v416, %v468
    %v472 = vsel %vm105, %v469, 0
    %v475 = vsel %vm105, %v470, 0
    %477 = vmatpush.msra.mxu0 0.0
    %478 = vmatpush.msra.mxu0 0.0
    %479 = vmatpush.msra.mxu0 0.0
    %480 = vmatpush.msra.mxu0 0.0
    %481 = vmatpush.msra.mxu0 0.0
    %482 = vmatpush.msra.mxu0 0.0
    %483 = vmatpush.msra.mxu0 0.0
    %484 = vmatpush.msra.mxu0 0.0
    %485 = vmatpush.msra.mxu0 0.0
    %486 = vmatpush.msra.mxu0 0.0
    %487 = vmatpush.msra.mxu0 0.0
    %488 = vmatpush.msra.mxu0 0.0
    %489 = vmatpush.msra.mxu0 %v81
    %490 = vmatpush.msra.mxu0 %v80
    %491 = vmatpush.msra.mxu0 %v79
    %492 = vmatpush.msra.mxu0 %v78
    %493 = vmatmul.f32.gmra.mxu0 %v472
    %v494 = vpop.f32.mrf.mxu0
    %v495 = vadd.f32 0.0, %v494
    %496 = vmatmul.f32.gmra.mxu0 %v475
    %v497 = vpop.f32.mrf.mxu0
    %v498 = vadd.f32 0.0, %v497
    %499 = vdwg.mxu0
    %v500 = vadd.f32 %v57, %v495
    %v501 = vadd.f32 %v58, %v498
    %v503 = vperm.slane %v82, 0
    %v505 = vadd.f32 %v500, %v503
    %v506 = vadd.f32 %v501, %v503
    %v507 = vsel %vm105, %v505, 0.0
    %508 = vadd.xlane.f32.xlu0 %v507
    %v509 = vpop.xlane.xlu0 %508
    %v510 = vsel %vm105, %v506, 0.0
    %511 = vadd.xlane.f32.xlu0 %v510
    %v512 = vpop.xlane.xlu0 %511
    %v513 = vmul.f32 %v509, %v118
    %v514 = vmul.f32 %v512, %v118
    %v515 = vmul.f32 %v505, %v505
    %v516 = vmul.f32 %v506, %v506
    %v517 = vsel %vm105, %v515, 0.0
    %518 = vadd.xlane.f32.xlu0 %v517
    %v519 = vpop.xlane.xlu0 %518
    %v520 = vsel %vm105, %v516, 0.0
    %521 = vadd.xlane.f32.xlu0 %v520
    %v522 = vpop.xlane.xlu0 %521
    %v523 = vmul.f32 %v519, %v118
    %v524 = vmul.f32 %v522, %v118
    %v525 = vmul.f32 %v513, %v513
    %v526 = vmul.f32 %v514, %v514
    %v527 = vsub.f32 %v523, %v525
    %v528 = vsub.f32 %v524, %v526
    %v529 = vsub.f32 %v505, %v513
    %v530 = vsub.f32 %v506, %v514
    %v531 = vadd.f32 %v527, 1e-06
    %v532 = vadd.f32 %v528, 1e-06
    %v533 = vrsqrt.pop %v531
    %v534 = vmul.f32 %v533, %v531
    %v535 = vmul.f32 %v534, %v533
    %v536 = vmul.f32 0.5, %v535
    %v537 = vsub.f32 1.5, %v536
    %v538 = vmul.f32 %v533, %v537
    %vm539 = vweird.f32 %v531
    %vm540 = vweird.f32 %v533
    %vm541 = vmor %vm539, %vm540
    %v542 = vsel %vm541, %v533, %v538
    %v543 = vrsqrt.pop %v532
    %v544 = vmul.f32 %v543, %v532
    %v545 = vmul.f32 %v544, %v543
    %v546 = vmul.f32 0.5, %v545
    %v547 = vsub.f32 1.5, %v546
    %v548 = vmul.f32 %v543, %v547
    %vm549 = vweird.f32 %v532
    %vm550 = vweird.f32 %v543
    %vm551 = vmor %vm549, %vm550
    %v552 = vsel %vm551, %v543, %v548
    %v553 = vmul.f32 %v529, %v542
    %v554 = vmul.f32 %v530, %v552
    %v556 = vperm.slane %v71, 0
    %v558 = vmul.f32 %v553, %v556
    %v559 = vmul.f32 %v554, %v556
    %v561 = vperm.slane %v72, 0
    %v563 = vadd.f32 %v558, %v561
    %v564 = vadd.f32 %v559, %v561
    %v566 = vperm.slane %v87, 0
    %v569 = vsel %vm105, %v563, 0
    %v572 = vsel %vm105, %v564, 0
    %574 = vmatpush.msra.mxu0 0.0
    %575 = vmatpush.msra.mxu0 0.0
    %576 = vmatpush.msra.mxu0 0.0
    %577 = vmatpush.msra.mxu0 0.0
    %578 = vmatpush.msra.mxu0 0.0
    %579 = vmatpush.msra.mxu0 0.0
    %580 = vmatpush.msra.mxu0 0.0
    %581 = vmatpush.msra.mxu0 0.0
    %582 = vmatpush.msra.mxu0 0.0
    %583 = vmatpush.msra.mxu0 0.0
    %584 = vmatpush.msra.mxu0 0.0
    %585 = vmatpush.msra.mxu0 0.0
    %586 = vmatpush.msra.mxu0 %v86
    %587 = vmatpush.msra.mxu0 %v85
    %588 = vmatpush.msra.mxu0 %v84
    %589 = vmatpush.msra.mxu0 %v83
    %590 = vmatmul.f32.gmra.mxu0 %v569
    %v591 = vpop.f32.mrf.mxu0
    %v592 = vadd.f32 %v566, %v591
    %593 = vmatmul.f32.gmra.mxu0 %v572
    %v594 = vpop.f32.mrf.mxu0
    %v595 = vadd.f32 %v566, %v594
    %596 = vdwg.mxu0
    %v597 = vmul.f32 %v592, 0.5
    %v598 = vmul.f32 %v595, 0.5
    %v599 = vmul.f32 %v592, 0.044715
    %v600 = vmul.f32 %v595, 0.044715
    %v601 = vmul.f32 %v599, %v592
    %v602 = vmul.f32 %v600, %v595
    %v603 = vmul.f32 %v601, %v592
    %v604 = vmul.f32 %v602, %v595
    %v605 = vadd.f32 %v592, %v603
    %v606 = vadd.f32 %v595, %v604
    %v607 = vmul.f32 %v605, 0.7978846
    %v608 = vmul.f32 %v606, 0.7978846
    %v609 = vtanh.pop %v607
    %v610 = vtanh.pop %v608
    %v611 = vadd.f32 %v609, 1.0
    %v612 = vadd.f32 %v610, 1.0
    %v613 = vmul.f32 %v597, %v611
    %v614 = vmul.f32 %v598, %v612
    %615 = vmatpush.msra.mxu0 %v103
    %616 = vmatpush.msra.mxu0 %v102
    %617 = vmatpush.msra.mxu0 %v101
    %618 = vmatpush.msra.mxu0 %v100
    %619 = vmatpush.msra.mxu0 %v99
    %620 = vmatpush.msra.mxu0 %v98
    %621 = vmatpush.msra.mxu0 %v97
    %622 = vmatpush.msra.mxu0 %v96
    %623 = vmatpush.msra.mxu0 %v95
    %624 = vmatpush.msra.mxu0 %v94
    %625 = vmatpush.msra.mxu0 %v93
    %626 = vmatpush.msra.mxu0 %v92
    %627 = vmatpush.msra.mxu0 %v91
    %628 = vmatpush.msra.mxu0 %v90
    %629 = vmatpush.msra.mxu0 %v89
    %630 = vmatpush.msra.mxu0 %v88
    %631 = vmatmul.f32.gmra.mxu0 %v613
    %v632 = vpop.f32.mrf.mxu0
    %v633 = vadd.f32 0.0, %v632
    %634 = vmatmul.f32.gmra.mxu0 %v614
    %v635 = vpop.f32.mrf.mxu0
    %v636 = vadd.f32 0.0, %v635
    %637 = vdwg.mxu0
    %v638 = vadd.f32 %v505, %v633
    %v639 = vadd.f32 %v506, %v636
    %v641 = vperm.slane %v104, 0
    %v643 = vadd.f32 %v638, %v641
    %v644 = vadd.f32 %v639, %v641
    %s645 = scalar_lea.vmem %s3, 1
    %v646 = vld [vmem:[%s645] sm:$0x1]
    %s647 = scalar_lea.vmem %s4, 1
    %v648 = vld [vmem:[%s647] sm:$0x1]
    %s649 = scalar_lea.vmem %s9, 1
    %v650 = vld [vmem:[%s649] sm:$0x1]
    %s651 = scalar_lea.vmem %s10, 1
    %v652 = vld [vmem:[%s651] sm:$0x1]
    %s653 = scalar_lea.vmem %s5, 32
    %v654 = vld [vmem:[%s653] sm:$0xff]
    %v655 = vld [vmem:[%s653 + $0x8] sm:$0xff]
    %v656 = vld [vmem:[%s653 + $0x10] sm:$0xff]
    %v657 = vld [vmem:[%s653 + $0x18] sm:$0xff]
    %s658 = scalar_lea.vmem %s6, 1
    %v659 = vld [vmem:[%s658] sm:$0x1]
    %s660 = scalar_lea.vmem %s7, 32
    %v661 = vld [vmem:[%s660] sm:$0xff]
    %v662 = vld [vmem:[%s660 + $0x8] sm:$0xff]
    %v663 = vld [vmem:[%s660 + $0x10] sm:$0xff]
    %v664 = vld [vmem:[%s660 + $0x18] sm:$0xff]
    %s665 = scalar_lea.vmem %s8, 1
    %v666 = vld [vmem:[%s665] sm:$0x1]
    %s667 = scalar_lea.vmem %s11, 32
    %v668 = vld [vmem:[%s667] sm:$0xff]
    %v669 = vld [vmem:[%s667 + $0x8] sm:$0xff]
    %v670 = vld [vmem:[%s667 + $0x10] sm:$0xff]
    %v671 = vld [vmem:[%s667 + $0x18] sm:$0xff]
    %s672 = scalar_lea.vmem %s12, 1
    %v673 = vld [vmem:[%s672] sm:$0x1]
    %s674 = scalar_lea.vmem %s13, 128
    %v675 = vld [vmem:[%s674] sm:$0xff]
    %v676 = vld [vmem:[%s674 + $0x8] sm:$0xff]
    %v677 = vld [vmem:[%s674 + $0x10] sm:$0xff]
    %v678 = vld [vmem:[%s674 + $0x18] sm:$0xff]
    %v679 = vld [vmem:[%s674 + $0x20] sm:$0xff]
    %v680 = vld [vmem:[%s674 + $0x28] sm:$0xff]
    %v681 = vld [vmem:[%s674 + $0x30] sm:$0xff]
    %v682 = vld [vmem:[%s674 + $0x38] sm:$0xff]
    %v683 = vld [vmem:[%s674 + $0x40] sm:$0xff]
    %v684 = vld [vmem:[%s674 + $0x48] sm:$0xff]
    %v685 = vld [vmem:[%s674 + $0x50] sm:$0xff]
    %v686 = vld [vmem:[%s674 + $0x58] sm:$0xff]
    %v687 = vld [vmem:[%s674 + $0x60] sm:$0xff]
    %v688 = vld [vmem:[%s674 + $0x68] sm:$0xff]
    %v689 = vld [vmem:[%s674 + $0x70] sm:$0xff]
    %v690 = vld [vmem:[%s674 + $0x78] sm:$0xff]
    %s691 = scalar_lea.vmem %s14, 1
    %v692 = vld [vmem:[%s691] sm:$0x1]
    %v693 = vsel %vm105, %v643, 0.0
    %694 = vadd.xlane.f32.xlu0 %v693
    %v695 = vpop.xlane.xlu0 %694
    %v696 = vsel %vm105, %v644, 0.0
    %697 = vadd.xlane.f32.xlu0 %v696
    %v698 = vpop.xlane.xlu0 %697
    %v699 = vmul.f32 %v695, %v118
    %v700 = vmul.f32 %v698, %v118
    %v701 = vmul.f32 %v643, %v643
    %v702 = vmul.f32 %v644, %v644
    %v703 = vsel %vm105, %v701, 0.0
    %704 = vadd.xlane.f32.xlu0 %v703
    %v705 = vpop.xlane.xlu0 %704
    %v706 = vsel %vm105, %v702, 0.0
    %707 = vadd.xlane.f32.xlu0 %v706
    %v708 = vpop.xlane.xlu0 %707
    %v709 = vmul.f32 %v705, %v118
    %v710 = vmul.f32 %v708, %v118
    %v711 = vmul.f32 %v699, %v699
    %v712 = vmul.f32 %v700, %v700
    %v713 = vsub.f32 %v709, %v711
    %v714 = vsub.f32 %v710, %v712
    %v715 = vsub.f32 %v643, %v699
    %v716 = vsub.f32 %v644, %v700
    %v717 = vadd.f32 %v713, 1e-06
    %v718 = vadd.f32 %v714, 1e-06
    %v719 = vrsqrt.pop %v717
    %v720 = vmul.f32 %v719, %v717
    %v721 = vmul.f32 %v720, %v719
    %v722 = vmul.f32 0.5, %v721
    %v723 = vsub.f32 1.5, %v722
    %v724 = vmul.f32 %v719, %v723
    %vm725 = vweird.f32 %v717
    %vm726 = vweird.f32 %v719
    %vm727 = vmor %vm725, %vm726
    %v728 = vsel %vm727, %v719, %v724
    %v729 = vrsqrt.pop %v718
    %v730 = vmul.f32 %v729, %v718
    %v731 = vmul.f32 %v730, %v729
    %v732 = vmul.f32 0.5, %v731
    %v733 = vsub.f32 1.5, %v732
    %v734 = vmul.f32 %v729, %v733
    %vm735 = vweird.f32 %v718
    %vm736 = vweird.f32 %v729
    %vm737 = vmor %vm735, %vm736
    %v738 = vsel %vm737, %v729, %v734
    %v739 = vmul.f32 %v715, %v728
    %v740 = vmul.f32 %v716, %v738
    %v742 = vperm.slane %v646, 0
    %v744 = vmul.f32 %v739, %v742
    %v745 = vmul.f32 %v740, %v742
    %v747 = vperm.slane %v648, 0
    %v749 = vadd.f32 %v744, %v747
    %v750 = vadd.f32 %v745, %v747
    %v752 = vperm.slane %v659, 0
    %v755 = vsel %vm105, %v749, 0
    %v758 = vsel %vm105, %v750, 0
    %760 = vmatpush.msra.mxu0 0.0
    %761 = vmatpush.msra.mxu0 0.0
    %762 = vmatpush.msra.mxu0 0.0
    %763 = vmatpush.msra.mxu0 0.0
    %764 = vmatpush.msra.mxu0 0.0
    %765 = vmatpush.msra.mxu0 0.0
    %766 = vmatpush.msra.mxu0 0.0
    %767 = vmatpush.msra.mxu0 0.0
    %768 = vmatpush.msra.mxu0 0.0
    %769 = vmatpush.msra.mxu0 0.0
    %770 = vmatpush.msra.mxu0 0.0
    %771 = vmatpush.msra.mxu0 0.0
    %772 = vmatpush.msra.mxu0 %v657
    %773 = vmatpush.msra.mxu0 %v656
    %774 = vmatpush.msra.mxu0 %v655
    %775 = vmatpush.msra.mxu0 %v654
    %776 = vmatmul.f32.gmra.mxu0 %v755
    %v777 = vpop.f32.mrf.mxu0
    %v778 = vadd.f32 %v752, %v777
    %779 = vmatmul.f32.gmra.mxu0 %v758
    %v780 = vpop.f32.mrf.mxu0
    %v781 = vadd.f32 %v752, %v780
    %782 = vdwg.mxu0
    %v783 = vmul.f32 %v778, %v212
    %v784 = vmul.f32 %v781, %v214
    %v785 = vmul.f32 %v778, %v216
    %v786 = vmul.f32 %v781, %v218
    %v787 = vmul.f32 %v778, %v220
    %v788 = vmul.f32 %v781, %v222
    %v789 = vmul.f32 %v778, %v224
    %v790 = vmul.f32 %v781, %v226
    %v791 = vmul.f32 %v778, %v244
    %v792 = vmul.f32 %v781, %v246
    %v793 = vmul.f32 %v778, %v248
    %v794 = vmul.f32 %v781, %v250
    %v795 = vmul.f32 %v778, %v252
    %v796 = vmul.f32 %v781, %v254
    %v797 = vmul.f32 %v778, %v256
    %v798 = vmul.f32 %v781, %v258
    %807 = vrot.lane.b32.xlu0 %v783, 96
    %v808 = vpop.permute.xlu0 %807
    %809 = vrot.lane.b32.xlu0 %v784, 96
    %v810 = vpop.permute.xlu0 %809
    %811 = vrot.lane.b32.xlu0 %v785, 96
    %v812 = vpop.permute.xlu0 %811
    %813 = vrot.lane.b32.xlu0 %v786, 96
    %v814 = vpop.permute.xlu0 %813
    %815 = vrot.lane.b32.xlu0 %v787, 96
    %v816 = vpop.permute.xlu0 %815
    %817 = vrot.lane.b32.xlu0 %v788, 96
    %v818 = vpop.permute.xlu0 %817
    %819 = vrot.lane.b32.xlu0 %v789, 96
    %v820 = vpop.permute.xlu0 %819
    %821 = vrot.lane.b32.xlu0 %v790, 96
    %v822 = vpop.permute.xlu0 %821
    %v824 = vsel %vm105, %v778, 0
    %v827 = vsel %vm105, %v781, 0
    %v829 = vsel %vm105, %v808, 0
    %v831 = vsel %vm105, %v810, 0
    %v833 = vsel %vm105, %v812, 0
    %v835 = vsel %vm105, %v814, 0
    %v837 = vsel %vm105, %v816, 0
    %v839 = vsel %vm105, %v818, 0
    %v841 = vsel %vm105, %v820, 0
    %v843 = vsel %vm105, %v822, 0
    %845 = vmatpush.xpose.msra.mxu0 0.0
    %846 = vmatpush.xpose.msra.mxu0 0.0
    %847 = vmatpush.xpose.msra.mxu0 0.0
    %848 = vmatpush.xpose.msra.mxu0 0.0
    %849 = vmatpush.xpose.msra.mxu0 0.0
    %850 = vmatpush.xpose.msra.mxu0 0.0
    %851 = vmatpush.xpose.msra.mxu0 0.0
    %852 = vmatpush.xpose.msra.mxu0 0.0
    %853 = vmatpush.xpose.msra.mxu0 %v843
    %854 = vmatpush.xpose.msra.mxu0 %v841
    %855 = vmatpush.xpose.msra.mxu0 %v839
    %856 = vmatpush.xpose.msra.mxu0 %v837
    %857 = vmatpush.xpose.msra.mxu0 %v835
    %858 = vmatpush.xpose.msra.mxu0 %v833
    %859 = vmatpush.xpose.msra.mxu0 %v831
    %860 = vmatpush.xpose.msra.mxu0 %v829
    %861 = vmatmul.f32.gmra.mxu0 %v824
    %v862 = vpop.f32.mrf.mxu0
    %v863 = vadd.f32 %v59, %v862
    %864 = vmatmul.f32.gmra.mxu0 %v827
    %v865 = vpop.f32.mrf.mxu0
    %v866 = vadd.f32 %v60, %v865
    %867 = vdwg.mxu0
    %v868 = vsel %vm344, %v863, -inf
    %869 = vmax.xlane.f32.xlu0 %v868
    %v870 = vpop.xlane.xlu0 %869
    %v871 = vsel %vm344, %v866, -inf
    %872 = vmax.xlane.f32.xlu0 %v871
    %v873 = vpop.xlane.xlu0 %872
    %v874 = vsub.f32 %v863, %v870
    %v875 = vsub.f32 %v866, %v873
    %v876 = vmul.f32 %v874, 1.442695
    %v877 = vpow.pop %v876
    %v878 = vmul.f32 %v875, 1.442695
    %v879 = vpow.pop %v878
    %888 = vrot.lane.b32.xlu0 %v791, 64
    %v889 = vpop.permute.xlu0 %888
    %890 = vrot.lane.b32.xlu0 %v792, 64
    %v891 = vpop.permute.xlu0 %890
    %892 = vrot.lane.b32.xlu0 %v793, 64
    %v893 = vpop.permute.xlu0 %892
    %894 = vrot.lane.b32.xlu0 %v794, 64
    %v895 = vpop.permute.xlu0 %894
    %896 = vrot.lane.b32.xlu0 %v795, 64
    %v897 = vpop.permute.xlu0 %896
    %898 = vrot.lane.b32.xlu0 %v796, 64
    %v899 = vpop.permute.xlu0 %898
    %900 = vrot.lane.b32.xlu0 %v797, 64
    %v901 = vpop.permute.xlu0 %900
    %902 = vrot.lane.b32.xlu0 %v798, 64
    %v903 = vpop.permute.xlu0 %902
    %v913 = vsel %vm344, %v877, 0
    %v916 = vsel %vm344, %v879, 0
    %918 = vmatpush.msra.mxu0 0.0
    %919 = vmatpush.msra.mxu0 0.0
    %920 = vmatpush.msra.mxu0 0.0
    %921 = vmatpush.msra.mxu0 0.0
    %922 = vmatpush.msra.mxu0 0.0
    %923 = vmatpush.msra.mxu0 0.0
    %924 = vmatpush.msra.mxu0 0.0
    %925 = vmatpush.msra.mxu0 0.0
    %926 = vmatpush.msra.mxu0 %v903
    %927 = vmatpush.msra.mxu0 %v901
    %928 = vmatpush.msra.mxu0 %v899
    %929 = vmatpush.msra.mxu0 %v897
    %930 = vmatpush.msra.mxu0 %v895
    %931 = vmatpush.msra.mxu0 %v893
    %932 = vmatpush.msra.mxu0 %v891
    %933 = vmatpush.msra.mxu0 %v889
    %934 = vmatmul.f32.gmra.mxu0 %v913
    %v935 = vpop.f32.mrf.mxu0
    %v936 = vadd.f32 0.0, %v935
    %937 = vmatmul.f32.gmra.mxu0 %v916
    %v938 = vpop.f32.mrf.mxu0
    %v939 = vadd.f32 0.0, %v938
    %940 = vdwg.mxu0
    %941 = vmatpush.msra.mxu0 0.0
    %942 = vmatpush.msra.mxu0 0.0
    %943 = vmatpush.msra.mxu0 0.0
    %944 = vmatpush.msra.mxu0 0.0
    %945 = vmatpush.msra.mxu0 0.0
    %946 = vmatpush.msra.mxu0 0.0
    %947 = vmatpush.msra.mxu0 0.0
    %948 = vmatpush.msra.mxu0 0.0
    %949 = vmatpush.msra.mxu0 %v68
    %950 = vmatpush.msra.mxu0 %v67
    %951 = vmatpush.msra.mxu0 %v66
    %952 = vmatpush.msra.mxu0 %v65
    %953 = vmatpush.msra.mxu0 %v64
    %954 = vmatpush.msra.mxu0 %v63
    %955 = vmatpush.msra.mxu0 %v62
    %956 = vmatpush.msra.mxu0 %v61
    %957 = vmatmul.f32.gmra.mxu0 %v913
    %v958 = vpop.f32.mrf.mxu0
    %v959 = vadd.f32 0.0, %v958
    %960 = vmatmul.f32.gmra.mxu0 %v916
    %v961 = vpop.f32.mrf.mxu0
    %v962 = vadd.f32 0.0, %v961
    %963 = vdwg.mxu0
    %v964 = vrcp.pop %v959
    %v965 = vmul.f32 %v959, %v964
    %v966 = vsub.f32 1.0, %v965
    %v967 = vmul.f32 %v964, %v966
    %v968 = vadd.f32 %v964, %v967
    %vm969 = vweird.f32 %v959
    %vm970 = vweird.f32 %v964
    %vm971 = vmor %vm969, %vm970
    %v972 = vsel %vm971, %v964, %v968
    %v973 = vand.u32 2147483647, %v959
    %vm974 = vcmp.eq.f32.partialorder %v973, 8.507059e+37
    %v975 = vand.u32 %v959, 2147483648
    %v976 = vor.u32 1.1754944e-38, %v975
    %v977 = vsel %vm974, %v976, %v972
    %v978 = vrcp.pop %v962
    %v979 = vmul.f32 %v962, %v978
    %v980 = vsub.f32 1.0, %v979
    %v981 = vmul.f32 %v978, %v980
    %v982 = vadd.f32 %v978, %v981
    %vm983 = vweird.f32 %v962
    %vm984 = vweird.f32 %v978
    %vm985 = vmor %vm983, %vm984
    %v986 = vsel %vm985, %v978, %v982
    %v987 = vand.u32 2147483647, %v962
    %vm988 = vcmp.eq.f32.partialorder %v987, 8.507059e+37
    %v989 = vand.u32 %v962, 2147483648
    %v990 = vor.u32 1.1754944e-38, %v989
    %v991 = vsel %vm988, %v990, %v986
    %v992 = vmul.f32 %v936, %v977
    %v993 = vmul.f32 %v939, %v991
    %v995 = vsel %vm105, %v992, 0
    %v998 = vsel %vm105, %v993, 0
    %1000 = vmatpush.msra.mxu0 0.0
    %1001 = vmatpush.msra.mxu0 0.0
    %1002 = vmatpush.msra.mxu0 0.0
    %1003 = vmatpush.msra.mxu0 0.0
    %1004 = vmatpush.msra.mxu0 0.0
    %1005 = vmatpush.msra.mxu0 0.0
    %1006 = vmatpush.msra.mxu0 0.0
    %1007 = vmatpush.msra.mxu0 0.0
    %1008 = vmatpush.msra.mxu0 0.0
    %1009 = vmatpush.msra.mxu0 0.0
    %1010 = vmatpush.msra.mxu0 0.0
    %1011 = vmatpush.msra.mxu0 0.0
    %1012 = vmatpush.msra.mxu0 %v664
    %1013 = vmatpush.msra.mxu0 %v663
    %1014 = vmatpush.msra.mxu0 %v662
    %1015 = vmatpush.msra.mxu0 %v661
    %1016 = vmatmul.f32.gmra.mxu0 %v995
    %v1017 = vpop.f32.mrf.mxu0
    %v1018 = vadd.f32 0.0, %v1017
    %1019 = vmatmul.f32.gmra.mxu0 %v998
    %v1020 = vpop.f32.mrf.mxu0
    %v1021 = vadd.f32 0.0, %v1020
    %1022 = vdwg.mxu0
    %v1023 = vadd.f32 %v643, %v1018
    %v1024 = vadd.f32 %v644, %v1021
    %v1026 = vperm.slane %v666, 0
    %v1028 = vadd.f32 %v1023, %v1026
    %v1029 = vadd.f32 %v1024, %v1026
    %v1030 = vsel %vm105, %v1028, 0.0
    %1031 = vadd.xlane.f32.xlu0 %v1030
    %v1032 = vpop.xlane.xlu0 %1031
    %v1033 = vsel %vm105, %v1029, 0.0
    %1034 = vadd.xlane.f32.xlu0 %v1033
    %v1035 = vpop.xlane.xlu0 %1034
    %v1036 = vmul.f32 %v1032, %v118
    %v1037 = vmul.f32 %v1035, %v118
    %v1038 = vmul.f32 %v1028, %v1028
    %v1039 = vmul.f32 %v1029, %v1029
    %v1040 = vsel %vm105, %v1038, 0.0
    %1041 = vadd.xlane.f32.xlu0 %v1040
    %v1042 = vpop.xlane.xlu0 %1041
    %v1043 = vsel %vm105, %v1039, 0.0
    %1044 = vadd.xlane.f32.xlu0 %v1043
    %v1045 = vpop.xlane.xlu0 %1044
    %v1046 = vmul.f32 %v1042, %v118
    %v1047 = vmul.f32 %v1045, %v118
    %v1048 = vmul.f32 %v1036, %v1036
    %v1049 = vmul.f32 %v1037, %v1037
    %v1050 = vsub.f32 %v1046, %v1048
    %v1051 = vsub.f32 %v1047, %v1049
    %v1052 = vsub.f32 %v1028, %v1036
    %v1053 = vsub.f32 %v1029, %v1037
    %v1054 = vadd.f32 %v1050, 1e-06
    %v1055 = vadd.f32 %v1051, 1e-06
    %v1056 = vrsqrt.pop %v1054
    %v1057 = vmul.f32 %v1056, %v1054
    %v1058 = vmul.f32 %v1057, %v1056
    %v1059 = vmul.f32 0.5, %v1058
    %v1060 = vsub.f32 1.5, %v1059
    %v1061 = vmul.f32 %v1056, %v1060
    %vm1062 = vweird.f32 %v1054
    %vm1063 = vweird.f32 %v1056
    %vm1064 = vmor %vm1062, %vm1063
    %v1065 = vsel %vm1064, %v1056, %v1061
    %v1066 = vrsqrt.pop %v1055
    %v1067 = vmul.f32 %v1066, %v1055
    %v1068 = vmul.f32 %v1067, %v1066
    %v1069 = vmul.f32 0.5, %v1068
    %v1070 = vsub.f32 1.5, %v1069
    %v1071 = vmul.f32 %v1066, %v1070
    %vm1072 = vweird.f32 %v1055
    %vm1073 = vweird.f32 %v1066
    %vm1074 = vmor %vm1072, %vm1073
    %v1075 = vsel %vm1074, %v1066, %v1071
    %v1076 = vmul.f32 %v1052, %v1065
    %v1077 = vmul.f32 %v1053, %v1075
    %v1079 = vperm.slane %v650, 0
    %v1081 = vmul.f32 %v1076, %v1079
    %v1082 = vmul.f32 %v1077, %v1079
    %v1084 = vperm.slane %v652, 0
    %v1086 = vadd.f32 %v1081, %v1084
    %v1087 = vadd.f32 %v1082, %v1084
    %v1089 = vperm.slane %v673, 0
    %v1092 = vsel %vm105, %v1086, 0
    %v1095 = vsel %vm105, %v1087, 0
    %1097 = vmatpush.msra.mxu0 0.0
    %1098 = vmatpush.msra.mxu0 0.0
    %1099 = vmatpush.msra.mxu0 0.0
    %1100 = vmatpush.msra.mxu0 0.0
    %1101 = vmatpush.msra.mxu0 0.0
    %1102 = vmatpush.msra.mxu0 0.0
    %1103 = vmatpush.msra.mxu0 0.0
    %1104 = vmatpush.msra.mxu0 0.0
    %1105 = vmatpush.msra.mxu0 0.0
    %1106 = vmatpush.msra.mxu0 0.0
    %1107 = vmatpush.msra.mxu0 0.0
    %1108 = vmatpush.msra.mxu0 0.0
    %1109 = vmatpush.msra.mxu0 %v671
    %1110 = vmatpush.msra.mxu0 %v670
    %1111 = vmatpush.msra.mxu0 %v669
    %1112 = vmatpush.msra.mxu0 %v668
    %1113 = vmatmul.f32.gmra.mxu0 %v1092
    %v1114 = vpop.f32.mrf.mxu0
    %v1115 = vadd.f32 %v1089, %v1114
    %1116 = vmatmul.f32.gmra.mxu0 %v1095
    %v1117 = vpop.f32.mrf.mxu0
    %v1118 = vadd.f32 %v1089, %v1117
    %1119 = vdwg.mxu0
    %v1120 = vmul.f32 %v1115, 0.5
    %v1121 = vmul.f32 %v1118, 0.5
    %v1122 = vmul.f32 %v1115, 0.044715
    %v1123 = vmul.f32 %v1118, 0.044715
    %v1124 = vmul.f32 %v1122, %v1115
    %v1125 = vmul.f32 %v1123, %v1118
    %v1126 = vmul.f32 %v1124, %v1115
    %v1127 = vmul.f32 %v1125, %v1118
    %v1128 = vadd.f32 %v1115, %v1126
    %v1129 = vadd.f32 %v1118, %v1127
    %v1130 = vmul.f32 %v1128, 0.7978846
    %v1131 = vmul.f32 %v1129, 0.7978846
    %v1132 = vtanh.pop %v1130
    %v1133 = vtanh.pop %v1131
    %v1134 = vadd.f32 %v1132, 1.0
    %v1135 = vadd.f32 %v1133, 1.0
    %v1136 = vmul.f32 %v1120, %v1134
    %v1137 = vmul.f32 %v1121, %v1135
    %1138 = vmatpush.msra.mxu0 %v690
    %1139 = vmatpush.msra.mxu0 %v689
    %1140 = vmatpush.msra.mxu0 %v688
    %1141 = vmatpush.msra.mxu0 %v687
    %1142 = vmatpush.msra.mxu0 %v686
    %1143 = vmatpush.msra.mxu0 %v685
    %1144 = vmatpush.msra.mxu0 %v684
    %1145 = vmatpush.msra.mxu0 %v683
    %1146 = vmatpush.msra.mxu0 %v682
    %1147 = vmatpush.msra.mxu0 %v681
    %1148 = vmatpush.msra.mxu0 %v680
    %1149 = vmatpush.msra.mxu0 %v679
    %1150 = vmatpush.msra.mxu0 %v678
    %1151 = vmatpush.msra.mxu0 %v677
    %1152 = vmatpush.msra.mxu0 %v676
    %1153 = vmatpush.msra.mxu0 %v675
    %1154 = vmatmul.f32.gmra.mxu0 %v1136
    %v1155 = vpop.f32.mrf.mxu0
    %v1156 = vadd.f32 0.0, %v1155
    %1157 = vmatmul.f32.gmra.mxu0 %v1137
    %v1158 = vpop.f32.mrf.mxu0
    %v1159 = vadd.f32 0.0, %v1158
    %1160 = vdwg.mxu0
    %v1161 = vadd.f32 %v1028, %v1156
    %v1162 = vadd.f32 %v1029, %v1159
    %v1164 = vperm.slane %v692, 0
    %v1166 = vadd.f32 %v1161, %v1164
    %v1167 = vadd.f32 %v1162, %v1164
    %v1168 = vld [vmem:[%s15] sm:$0x1]
    %v1169 = vld [vmem:[%s16] sm:$0x1]
    %v1170 = vsel %vm105, %v1166, 0.0
    %1171 = vadd.xlane.f32.xlu0 %v1170
    %v1172 = vpop.xlane.xlu0 %1171
    %v1173 = vsel %vm105, %v1167, 0.0
    %1174 = vadd.xlane.f32.xlu0 %v1173
    %v1175 = vpop.xlane.xlu0 %1174
    %v1176 = vmul.f32 %v1172, %v118
    %v1177 = vmul.f32 %v1175, %v118
    %v1178 = vmul.f32 %v1166, %v1166
    %v1179 = vmul.f32 %v1167, %v1167
    %v1180 = vsel %vm105, %v1178, 0.0
    %1181 = vadd.xlane.f32.xlu0 %v1180
    %v1182 = vpop.xlane.xlu0 %1181
    %v1183 = vsel %vm105, %v1179, 0.0
    %1184 = vadd.xlane.f32.xlu0 %v1183
    %v1185 = vpop.xlane.xlu0 %1184
    %v1186 = vmul.f32 %v1182, %v118
    %v1187 = vmul.f32 %v1185, %v118
    %v1188 = vmul.f32 %v1176, %v1176
    %v1189 = vmul.f32 %v1177, %v1177
    %v1190 = vsub.f32 %v1186, %v1188
    %v1191 = vsub.f32 %v1187, %v1189
    %v1192 = vsub.f32 %v1166, %v1176
    %v1193 = vsub.f32 %v1167, %v1177
    %v1194 = vadd.f32 %v1190, 1e-06
    %v1195 = vadd.f32 %v1191, 1e-06
    %v1196 = vrsqrt.pop %v1194
    %v1197 = vmul.f32 %v1196, %v1194
    %v1198 = vmul.f32 %v1197, %v1196
    %v1199 = vmul.f32 0.5, %v1198
    %v1200 = vsub.f32 1.5, %v1199
    %v1201 = vmul.f32 %v1196, %v1200
    %vm1202 = vweird.f32 %v1194
    %vm1203 = vweird.f32 %v1196
    %vm1204 = vmor %vm1202, %vm1203
    %v1205 = vsel %vm1204, %v1196, %v1201
    %v1206 = vrsqrt.pop %v1195
    %v1207 = vmul.f32 %v1206, %v1195
    %v1208 = vmul.f32 %v1207, %v1206
    %v1209 = vmul.f32 0.5, %v1208
    %v1210 = vsub.f32 1.5, %v1209
    %v1211 = vmul.f32 %v1206, %v1210
    %vm1212 = vweird.f32 %v1195
    %vm1213 = vweird.f32 %v1206
    %vm1214 = vmor %vm1212, %vm1213
    %v1215 = vsel %vm1214, %v1206, %v1211
    %v1216 = vmul.f32 %v1192, %v1205
    %v1217 = vmul.f32 %v1193, %v1215
    %v1219 = vperm.slane %v1168, 0
    %v1221 = vmul.f32 %v1216, %v1219
    %v1222 = vmul.f32 %v1217, %v1219
    %v1224 = vperm.slane %v1169, 0
    %v1226 = vadd.f32 %v1221, %v1224
    %v1227 = vadd.f32 %v1222, %v1224
    %1228 = vst.msk [vmem:[#allocation2] sm:$0xff] %vm105, %v1226
    %1229 = vst.msk [vmem:[#allocation2 + $0x8] sm:$0xff] %vm105, %v1227
    // Predicated region
    $region70: #{encoder_forward.1} parent=1 // pred_check
      _
    $region71: #{encoder_forward.1} parent=1 // pred_check_branch
      %1231 = sbr.rel (0) target = $region73
    $region72: #{encoder_forward.1} parent=1 // pred_region
      %1233 = vsyncadd [#allocation3], 0
      %s1234 = sshll.u32 [#allocation2], 4
      %s1235 = int_to_ptr.vmem [resolvable:$true] %s1234
      %s1236 = sshll.u32 %s17, 4
      %s1237 = int_to_ptr.hbm [resolvable:$true] %s1236
      %1242 = dma.vmem_to_hbm [thread:$0]  %s1235, 256, %s1237, [#allocation3], 128, 128, 8
    $region73: #{encoder_forward.1} parent=1 // pred_fallthru
      _
    // Predicated region
    $region74: #{encoder_forward.1} parent=1 // pred_check
      _
    $region75: #{encoder_forward.1} parent=1 // pred_check_branch
      %1244 = sbr.rel (0) target = $region77
    $region76: #{encoder_forward.1} parent=1 // pred_region
      %1246 = dma.done [#allocation3], 256
    $region77: #{encoder_forward.1} parent=1 // pred_fallthru
      _
    %1247 = vsyncpa [#allocation3], 1

</llo_original>
